<compile_context>
chip_gen: v5e
topology: v5e:2x2
jax: 0.10.0
libtpu: 0.0.40
codegen_flags: <defaults>
</compile_context>

<pallas_src>
import functools

import jax
import jax.numpy as jnp
import numpy as np
from jax import lax
from jax.experimental import pallas as pl
from jax.experimental.pallas import tpu as pltpu

_EPS = float(np.finfo(np.float32).eps)


def _cdiv(a, b):
    return -(-a // b)


def _round_up(v, m):
    return ((v + m - 1) // m) * m


@functools.lru_cache(maxsize=None)
def _dft_basis_np(frame_len, frame_hop, f_pad):
    """Fused real-DFT basis, transposed and split into hop-sized K chunks.

    Returns [q, 2*f_pad, hop]; rows [0:n_freq) are cos, rows
    [f_pad:f_pad+n_freq) are -sin, remaining rows are zero padding.
    """
    n_freq = frame_len // 2 + 1
    q = frame_len // frame_hop
    k = np.arange(n_freq, dtype=np.float64)[:, None]
    n = np.arange(frame_len, dtype=np.float64)[None, :]
    ang = 2.0 * np.pi * k * n / float(frame_len)
    bT = np.zeros((2 * f_pad, frame_len), dtype=np.float32)
    bT[:n_freq, :] = np.cos(ang)
    bT[f_pad:f_pad + n_freq, :] = -np.sin(ang)
    # bT[f, j*hop + c] -> basis[j, f, c]
    return np.ascontiguousarray(
        bT.reshape(2 * f_pad, q, frame_hop).transpose(1, 0, 2))


def _atan2(y, x):
    """Elementwise atan2 from basic VPU/EUP ops (abs err ~1e-6)."""
    abs_y = jnp.abs(y)
    abs_x = jnp.abs(x)
    big = jnp.maximum(abs_x, abs_y)
    small = jnp.minimum(abs_x, abs_y)
    a = small / jnp.maximum(big, np.float32(1e-30))          # in [0, 1]
    red = a > np.float32(0.41421356237309503)                 # tan(pi/8)
    t = jnp.where(red, (a - np.float32(1.0)) / (a + np.float32(1.0)), a)
    s = t * t
    p = np.float32(-1.0 / 11.0)
    p = p * s + np.float32(1.0 / 9.0)
    p = p * s + np.float32(-1.0 / 7.0)
    p = p * s + np.float32(1.0 / 5.0)
    p = p * s + np.float32(-1.0 / 3.0)
    p = p * s + np.float32(1.0)
    r = t * p + jnp.where(red, np.float32(np.pi / 4.0), np.float32(0.0))
    r = jnp.where(abs_y > abs_x, np.float32(np.pi / 2.0) - r, r)
    r = jnp.where(x < 0, np.float32(np.pi) - r, r)
    r = jnp.where(y < 0, -r, r)
    return r


def _stft_kernel(main_ref, tail_ref, basis_ref, mag_ref, phase_ref, *,
                 q, f_pad, n_freq, block_f, hop):
    """One grid step: block_f frames of one batch element.

    main_ref : [1, block_f, hop]   hops i*block_f .. i*block_f+block_f-1
    tail_ref : [1, 1, max(q-1,1), hop] first q-1 hops of the next block
    basis_ref: [q, 2*f_pad, hop]   fused [cos; -sin] basis, hop-chunked
    outputs  : [1, n_freq, block_f] (final torch.stft layout, frames on lanes)
    """
    main = main_ref[...].reshape(block_f, hop)
    tail = tail_ref[...].reshape(-1, hop)
    slab = jnp.concatenate([main, tail], axis=0)          # [block_f + q-1(+), hop]

    # frames[m, j*hop:(j+1)*hop] = slab[m + j]
    #   => acc[f, m] = sum_j basis[j, f, :] . slab[m + j, :]     (A @ B^T)
    dn = (((1,), (1,)), ((), ()))
    acc = lax.dot_general(basis_ref[0], slab[0:block_f], dn,
                          precision=lax.Precision.HIGHEST,
                          preferred_element_type=jnp.float32)
    for j in range(1, q):
        acc = acc + lax.dot_general(basis_ref[j], slab[j:j + block_f], dn,
                                    precision=lax.Precision.HIGHEST,
                                    preferred_element_type=jnp.float32)

    r = acc[:f_pad, :]                                     # [f_pad, block_f]
    im = acc[f_pad:, :]
    power = jnp.maximum(r * r + im * im, np.float32(_EPS))
    mag = jnp.sqrt(power)
    phase = _atan2(im + np.float32(_EPS), r + np.float32(_EPS))

    mag_ref[...] = mag[:n_freq, :][None]
    phase_ref[...] = phase[:n_freq, :][None]


def _choose_blocking(batch, num_frames):
    """block_f (frames per grid step) and number of frame blocks."""
    if num_frames < 128:
        return num_frames, 1
    max_bf = min(1024, (num_frames // 128) * 128)
    # make sure v7x's two TensorCores both get work even for batch == 1
    min_blocks = 2 if (batch == 1 and num_frames >= 256) else 1
    n_blocks = max(_cdiv(num_frames, 1024), min_blocks)
    block_f = min(max_bf, 128 * _cdiv(_cdiv(num_frames, n_blocks), 128))
    n_blocks = _cdiv(num_frames, block_f)
    return block_f, n_blocks


@functools.partial(jax.jit, static_argnums=(1, 2))
def _stft_layer_impl(x, frame_len, frame_hop):
    if x.ndim != 2:
        raise ValueError("x must be in [B, T]")
    B, T = x.shape
    if T < frame_len:
        raise ValueError("signal shorter than one frame")
    if frame_len % frame_hop != 0:
        # TODO(synk): general hop needs an extra partial-hop basis chunk; DTLN
        # always uses hop = frame_len / 4 (and the demo frame_len / 2).
        raise NotImplementedError("frame_hop must divide frame_len")

    hop = frame_hop
    q = frame_len // hop
    num_frames = 1 + (T - frame_len) // hop
    n_freq = frame_len // 2 + 1
    f_pad = _round_up(n_freq, 8)            # sublane-aligned real/imag split
    block_f, n_blocks = _choose_blocking(B, num_frames)

    # ---- contiguous hop-view of x (free reshape, no gather) ---------------
    nh_real = T // hop
    x_m = x if T == nh_real * hop else x[:, :nh_real * hop]
    x_hops = x_m.reshape(B, nh_real, hop).astype(jnp.float32)
    if num_frames < 128:
        # tiny-input path: hop dim == block_f so the block equals the full dim
        x_main = x_hops[:, :block_f, :]
    else:
        x_main = x_hops

    # ---- tiny per-block tail: first q-1 hops of the following block --------
    tq = max(q - 1, 1)
    tail_rows = (jnp.arange(n_blocks)[:, None] + 1) * block_f + jnp.arange(tq)[None, :]
    tail_rows = jnp.minimum(tail_rows, nh_real - 1)   # clamped rows only feed discarded frames
    x_tail = x_hops[:, tail_rows, :]                  # [B, n_blocks, tq, hop]

    basis = jnp.asarray(_dft_basis_np(frame_len, frame_hop, f_pad))  # [q, 2*f_pad, hop]

    kernel = functools.partial(_stft_kernel, q=q, f_pad=f_pad, n_freq=n_freq,
                               block_f=block_f, hop=hop)

    mag, phase = pl.pallas_call(
        kernel,
        out_shape=(
            jax.ShapeDtypeStruct((B, n_freq, num_frames), jnp.float32),
            jax.ShapeDtypeStruct((B, n_freq, num_frames), jnp.float32),
        ),
        grid=(B, n_blocks),
        in_specs=[
            pl.BlockSpec((1, block_f, hop), lambda b, i: (b, i, 0)),
            pl.BlockSpec((1, 1, tq, hop), lambda b, i: (b, i, 0, 0)),
            pl.BlockSpec((q, 2 * f_pad, hop), lambda b, i: (0, 0, 0)),   # resident
        ],
        out_specs=(
            pl.BlockSpec((1, n_freq, block_f), lambda b, i: (b, 0, i)),
            pl.BlockSpec((1, n_freq, block_f), lambda b, i: (b, 0, i)),
        ),
        compiler_params=pltpu.CompilerParams(
            dimension_semantics=("parallel", "parallel"),
        ),
    )(x_main, x_tail, basis)
    return mag, phase


def stft_layer(x, frame_len, frame_hop):
    """JAX/Pallas equivalent of STFT_Layer.forward.

    x: [B, T] float32
    returns: (mag, phase), each [B, frame_len // 2 + 1, num_frames]
    """
    return _stft_layer_impl(x, int(frame_len), int(frame_hop))


if __name__ == "__main__":
    frame_len, frame_hop = 64, 32
    B = 2
    num_frames_demo = 128
    T = frame_len + (num_frames_demo - 1) * frame_hop   # 4128 samples

    key = jax.random.PRNGKey(0)
    x = jax.random.normal(key, (B, T), dtype=jnp.float32)

    mag, phase = stft_layer(x, frame_len, frame_hop)
    jax.block_until_ready((mag, phase))

    # ---- pure-JAX reference (same math as torch.stft + the module) ---------
    n_freq = frame_len // 2 + 1
    nf = 1 + (T - frame_len) // frame_hop
    idx = (jnp.arange(nf) * frame_hop)[:, None] + jnp.arange(frame_len)[None, :]
    frames = x[:, idx]                                   # [B, nf, L]
    n = np.arange(frame_len, dtype=np.float64)[None, :]
    k = np.arange(n_freq, dtype=np.float64)[:, None]
    ang = 2.0 * np.pi * k * n / frame_len
    cosb = jnp.asarray(np.cos(ang), jnp.float32)         # [F, L]
    sinb = jnp.asarray(np.sin(ang), jnp.float32)
    hi = lax.Precision.HIGHEST
    r_ref = jnp.einsum("bml,fl->bfm", frames, cosb, precision=hi)
    i_ref = -jnp.einsum("bml,fl->bfm", frames, sinb, precision=hi)
    mag_ref = jnp.sqrt(jnp.maximum(r_ref ** 2 + i_ref ** 2, _EPS))
    ph_ref = jnp.arctan2(i_ref + _EPS, r_ref + _EPS)

    assert mag.shape == (B, n_freq, nf), mag.shape
    assert phase.shape == (B, n_freq, nf), phase.shape
    np.testing.assert_allclose(np.asarray(mag), np.asarray(mag_ref),
                               rtol=1e-4, atol=1e-4)
    # phase of near-silent bins is numerically ill-conditioned; check where
    # the spectrum has energy (covers >99.9% of bins for random input).
    msk = np.asarray(mag_ref) > 0.1
    np.testing.assert_allclose(np.asarray(phase)[msk], np.asarray(ph_ref)[msk],
                               rtol=1e-3, atol=1e-3)

    print("KERNEL_OK")
</pallas_src>

<mosaic_0001>
module attributes {stable_mosaic.version = 11 : i64} {
  func.func @_stft_kernel(%arg0: i32, %arg1: i32, %arg2: memref<1x128x32xf32, #tpu.memory_space<vmem>>, %arg3: memref<1x1x1x32xf32, #tpu.memory_space<vmem>>, %arg4: memref<2x80x32xf32, #tpu.memory_space<vmem>>, %arg5: memref<1x33x128xf32, #tpu.memory_space<vmem>>, %arg6: memref<1x33x128xf32, #tpu.memory_space<vmem>>) attributes {dimension_semantics = [#tpu.dimension_semantics<parallel>, #tpu.dimension_semantics<parallel>], iteration_bounds = array<i64: 2, 1>, scalar_prefetch = 0 : i64, scratch_operands = 0 : i64, tpu.core_type = #tpu.core_type<tc>, window_params = [{transform_indices = @transform_0, window_bounds = array<i64: 1, 128, 32>}, {transform_indices = @transform_1, window_bounds = array<i64: 1, 1, 1, 32>}, {pipeline_mode = #tpu.pipeline_mode<synchronous>, transform_indices = @transform_2, window_bounds = array<i64: 2, 80, 32>}, {transform_indices = @transform_3, window_bounds = array<i64: 1, 33, 128>}, {transform_indices = @transform_4, window_bounds = array<i64: 1, 33, 128>}]} {
    %c0 = arith.constant 0 : index
    %c0_0 = arith.constant 0 : index
    %c0_1 = arith.constant 0 : index
    %0 = vector.load %arg2[%c0, %c0_0, %c0_1] : memref<1x128x32xf32, #tpu.memory_space<vmem>>, vector<1x128x32xf32>
    %1 = vector.shape_cast %0 : vector<1x128x32xf32> to vector<128x32xf32>
    %c0_2 = arith.constant 0 : index
    %c0_3 = arith.constant 0 : index
    %c0_4 = arith.constant 0 : index
    %c0_5 = arith.constant 0 : index
    %2 = vector.load %arg3[%c0_2, %c0_3, %c0_4, %c0_5] : memref<1x1x1x32xf32, #tpu.memory_space<vmem>>, vector<1x1x1x32xf32>
    %3 = vector.shape_cast %2 : vector<1x1x1x32xf32> to vector<1x32xf32>
    %4 = tpu.concatenate %1, %3 in 0 : vector<128x32xf32>, vector<1x32xf32> -> vector<129x32xf32>
    %c0_6 = arith.constant 0 : index
    %c0_7 = arith.constant 0 : index
    %c0_8 = arith.constant 0 : index
    %5 = vector.load %arg4[%c0_6, %c0_7, %c0_8] : memref<2x80x32xf32, #tpu.memory_space<vmem>>, vector<1x80x32xf32>
    %6 = vector.shape_cast %5 : vector<1x80x32xf32> to vector<80x32xf32>
    %7 = vector.extract_strided_slice %4 {offsets = [0, 0], sizes = [128, 32], strides = [1, 1]} : vector<129x32xf32> to vector<128x32xf32>
    %cst = arith.constant dense<0.000000e+00> : vector<80x128xf32>
    %8 = tpu.matmul %6, %7, %cst {dimension_numbers = #tpu.dot_dimension_numbers<[1], [1], [0], [0], [0, 0, 1, 0], [], []>, precision = #tpu.contract_precision<fp32>} : vector<80x32xf32>, vector<128x32xf32>, vector<80x128xf32> -> vector<80x128xf32>
    %c1 = arith.constant 1 : index
    %c0_9 = arith.constant 0 : index
    %c0_10 = arith.constant 0 : index
    %9 = vector.load %arg4[%c1, %c0_9, %c0_10] : memref<2x80x32xf32, #tpu.memory_space<vmem>>, vector<1x80x32xf32>
    %10 = vector.shape_cast %9 : vector<1x80x32xf32> to vector<80x32xf32>
    %11 = vector.extract_strided_slice %4 {offsets = [1, 0], sizes = [128, 32], strides = [1, 1]} : vector<129x32xf32> to vector<128x32xf32>
    %cst_11 = arith.constant dense<0.000000e+00> : vector<80x128xf32>
    %12 = tpu.matmul %10, %11, %cst_11 {dimension_numbers = #tpu.dot_dimension_numbers<[1], [1], [0], [0], [0, 0, 1, 0], [], []>, precision = #tpu.contract_precision<fp32>} : vector<80x32xf32>, vector<128x32xf32>, vector<80x128xf32> -> vector<80x128xf32>
    %13 = arith.addf %8, %12 : vector<80x128xf32>
    %14 = vector.extract_strided_slice %13 {offsets = [0, 0], sizes = [40, 128], strides = [1, 1]} : vector<80x128xf32> to vector<40x128xf32>
    %15 = vector.extract_strided_slice %13 {offsets = [40, 0], sizes = [40, 128], strides = [1, 1]} : vector<80x128xf32> to vector<40x128xf32>
    %16 = arith.mulf %14, %14 : vector<40x128xf32>
    %17 = arith.mulf %15, %15 : vector<40x128xf32>
    %18 = arith.addf %16, %17 : vector<40x128xf32>
    %cst_12 = arith.constant 1.1920929E-7 : f32
    %19 = vector.broadcast %cst_12 : f32 to vector<40x128xf32>
    %20 = arith.maximumf %18, %19 : vector<40x128xf32>
    %21 = math.sqrt %20 : vector<40x128xf32>
    %cst_13 = arith.constant 1.1920929E-7 : f32
    %22 = vector.broadcast %cst_13 : f32 to vector<40x128xf32>
    %23 = arith.addf %15, %22 : vector<40x128xf32>
    %cst_14 = arith.constant 1.1920929E-7 : f32
    %24 = vector.broadcast %cst_14 : f32 to vector<40x128xf32>
    %25 = arith.addf %14, %24 : vector<40x128xf32>
    %26 = math.absf %23 : vector<40x128xf32>
    %27 = math.absf %25 : vector<40x128xf32>
    %28 = arith.maximumf %27, %26 : vector<40x128xf32>
    %29 = arith.minimumf %27, %26 : vector<40x128xf32>
    %cst_15 = arith.constant 1.000000e-30 : f32
    %30 = vector.broadcast %cst_15 : f32 to vector<40x128xf32>
    %31 = arith.maximumf %28, %30 : vector<40x128xf32>
    %32 = arith.divf %29, %31 : vector<40x128xf32>
    %cst_16 = arith.constant 0.414213568 : f32
    %33 = vector.broadcast %cst_16 : f32 to vector<40x128xf32>
    %34 = arith.cmpf ogt, %32, %33 : vector<40x128xf32>
    %cst_17 = arith.constant 1.000000e+00 : f32
    %35 = vector.broadcast %cst_17 : f32 to vector<40x128xf32>
    %36 = arith.subf %32, %35 : vector<40x128xf32>
    %cst_18 = arith.constant 1.000000e+00 : f32
    %37 = vector.broadcast %cst_18 : f32 to vector<40x128xf32>
    %38 = arith.addf %32, %37 : vector<40x128xf32>
    %39 = arith.divf %36, %38 : vector<40x128xf32>
    %40 = arith.select %34, %39, %32 : vector<40x128xi1>, vector<40x128xf32>
    %41 = arith.mulf %40, %40 : vector<40x128xf32>
    %cst_19 = arith.constant -0.0909090936 : f32
    %42 = vector.broadcast %cst_19 : f32 to vector<40x128xf32>
    %43 = arith.mulf %42, %41 : vector<40x128xf32>
    %cst_20 = arith.constant 0.111111112 : f32
    %44 = vector.broadcast %cst_20 : f32 to vector<40x128xf32>
    %45 = arith.addf %43, %44 : vector<40x128xf32>
    %46 = arith.mulf %45, %41 : vector<40x128xf32>
    %cst_21 = arith.constant -0.142857149 : f32
    %47 = vector.broadcast %cst_21 : f32 to vector<40x128xf32>
    %48 = arith.addf %46, %47 : vector<40x128xf32>
    %49 = arith.mulf %48, %41 : vector<40x128xf32>
    %cst_22 = arith.constant 2.000000e-01 : f32
    %50 = vector.broadcast %cst_22 : f32 to vector<40x128xf32>
    %51 = arith.addf %49, %50 : vector<40x128xf32>
    %52 = arith.mulf %51, %41 : vector<40x128xf32>
    %cst_23 = arith.constant -0.333333343 : f32
    %53 = vector.broadcast %cst_23 : f32 to vector<40x128xf32>
    %54 = arith.addf %52, %53 : vector<40x128xf32>
    %55 = arith.mulf %54, %41 : vector<40x128xf32>
    %cst_24 = arith.constant 1.000000e+00 : f32
    %56 = vector.broadcast %cst_24 : f32 to vector<40x128xf32>
    %57 = arith.addf %55, %56 : vector<40x128xf32>
    %58 = arith.mulf %40, %57 : vector<40x128xf32>
    %cst_25 = arith.constant 0.785398185 : f32
    %cst_26 = arith.constant 0.000000e+00 : f32
    %59 = vector.broadcast %cst_25 : f32 to vector<40x128xf32>
    %60 = vector.broadcast %cst_26 : f32 to vector<40x128xf32>
    %61 = arith.select %34, %59, %60 : vector<40x128xi1>, vector<40x128xf32>
    %62 = arith.addf %58, %61 : vector<40x128xf32>
    %63 = arith.cmpf ogt, %26, %27 : vector<40x128xf32>
    %cst_27 = arith.constant 1.57079637 : f32
    %64 = vector.broadcast %cst_27 : f32 to vector<40x128xf32>
    %65 = arith.subf %64, %62 : vector<40x128xf32>
    %66 = arith.select %63, %65, %62 : vector<40x128xi1>, vector<40x128xf32>
    %cst_28 = arith.constant 0.000000e+00 : f32
    %67 = vector.broadcast %cst_28 : f32 to vector<40x128xf32>
    %68 = arith.cmpf olt, %25, %67 : vector<40x128xf32>
    %cst_29 = arith.constant 3.14159274 : f32
    %69 = vector.broadcast %cst_29 : f32 to vector<40x128xf32>
    %70 = arith.subf %69, %66 : vector<40x128xf32>
    %71 = arith.select %68, %70, %66 : vector<40x128xi1>, vector<40x128xf32>
    %cst_30 = arith.constant 0.000000e+00 : f32
    %72 = vector.broadcast %cst_30 : f32 to vector<40x128xf32>
    %73 = arith.cmpf olt, %23, %72 : vector<40x128xf32>
    %cst_31 = arith.constant 0.000000e+00 : f32
    %74 = vector.broadcast %cst_31 : f32 to vector<40x128xf32>
    %75 = arith.subf %74, %71 : vector<40x128xf32>
    %76 = arith.select %73, %75, %71 : vector<40x128xi1>, vector<40x128xf32>
    %77 = vector.extract_strided_slice %21 {offsets = [0, 0], sizes = [33, 128], strides = [1, 1]} : vector<40x128xf32> to vector<33x128xf32>
    %78 = vector.shape_cast %77 : vector<33x128xf32> to vector<1x33x128xf32>
    %c0_32 = arith.constant 0 : index
    %c0_33 = arith.constant 0 : index
    %c0_34 = arith.constant 0 : index
    %79 = vector.load %arg5[%c0_32, %c0_33, %c0_34] : memref<1x33x128xf32, #tpu.memory_space<vmem>>, vector<1x33x128xf32>
    tpu.vector_store %arg5[%c0_32, %c0_33, %c0_34], %78 {strides = array<i32>} : memref<1x33x128xf32, #tpu.memory_space<vmem>>, vector<1x33x128xf32>,
    %80 = vector.extract_strided_slice %76 {offsets = [0, 0], sizes = [33, 128], strides = [1, 1]} : vector<40x128xf32> to vector<33x128xf32>
    %81 = vector.shape_cast %80 : vector<33x128xf32> to vector<1x33x128xf32>
    %c0_35 = arith.constant 0 : index
    %c0_36 = arith.constant 0 : index
    %c0_37 = arith.constant 0 : index
    %82 = vector.load %arg6[%c0_35, %c0_36, %c0_37] : memref<1x33x128xf32, #tpu.memory_space<vmem>>, vector<1x33x128xf32>
    tpu.vector_store %arg6[%c0_35, %c0_36, %c0_37], %81 {strides = array<i32>} : memref<1x33x128xf32, #tpu.memory_space<vmem>>, vector<1x33x128xf32>,
    return
  }
  func.func @transform_0(%arg0: i32, %arg1: i32) -> (i32, i32, i32) {
    %c0_i32 = arith.constant 0 : i32
    %c0_i32_0 = arith.constant 0 : i32
    return %arg0, %arg1, %c0_i32 : i32, i32, i32
  }
  func.func @transform_1(%arg0: i32, %arg1: i32) -> (i32, i32, i32, i32) {
    %c0_i32 = arith.constant 0 : i32
    %c0_i32_0 = arith.constant 0 : i32
    %c0_i32_1 = arith.constant 0 : i32
    return %arg0, %arg1, %c0_i32, %c0_i32_0 : i32, i32, i32, i32
  }
  func.func @transform_2(%arg0: i32, %arg1: i32) -> (i32, i32, i32) {
    %c0_i32 = arith.constant 0 : i32
    %c0_i32_0 = arith.constant 0 : i32
    %c0_i32_1 = arith.constant 0 : i32
    %c0_i32_2 = arith.constant 0 : i32
    return %c0_i32, %c0_i32_0, %c0_i32_1 : i32, i32, i32
  }
  func.func @transform_3(%arg0: i32, %arg1: i32) -> (i32, i32, i32) {
    %c0_i32 = arith.constant 0 : i32
    %c0_i32_0 = arith.constant 0 : i32
    return %arg0, %c0_i32, %arg1 : i32, i32, i32
  }
  func.func @transform_4(%arg0: i32, %arg1: i32) -> (i32, i32, i32) {
    %c0_i32 = arith.constant 0 : i32
    %c0_i32_0 = arith.constant 0 : i32
    return %arg0, %c0_i32, %arg1 : i32, i32, i32
  }
}

</mosaic_0001>

<llo_original>
// kernel: _stft_layer_impl.1
$region0: #{_stft_layer_impl.1}
  #allocation0 [shape = 'u32[]', space=smem, size = 0x4, offset = 0x4, fixed_abs, tag = 'smem constant byte address 0x4 - core index']
  #allocation1 [shape = 'u32[72,128]{1,0:T(1,128)}', space=vmem, size = 0x9000, scoped, tag = 'internal scratch']
  %s0 = inlined_call_operand.vmem [shape: f32[2,129,32], index: 0, kind: input, shape index: {}]
  %s1 = inlined_call_operand.vmem [shape: f32[2,1,1,32], index: 1, kind: input, shape index: {}]
  %s2 = inlined_call_operand.vmem [shape: f32[2,80,32], index: 2, kind: input, shape index: {}]
  %s3 = inlined_call_operand.vmem [shape: f32[2,33,128], index: 3, kind: output, shape index: {0}]
  %s4 = inlined_call_operand.vmem [shape: f32[2,33,128], index: 4, kind: output, shape index: {1}]
  %5 = xla_tuple %s3, %s4
  %s6 = sld [smem:[#allocation0]]
  $region53: #{_stft_layer_impl.1} parent=0
    _
  %s8 = ssub.s32 1, %s6
  %s9 = scalar_select 0, %s8, %s6
  loop: start=0, step=1, limit=4
  $region2: #{_stft_layer_impl.1} parent=0 // loop_pre_header
    _
  $region3: #{_stft_layer_impl.1} parent=0 // loop_header
    %s11 = sphi 0, %s15
    %p12 = scmp.ge.s32.totalorder %s11, 4
    %s18 = sphi 0, %s30
    %s19 = sphi 0, %s26
    %s20 = sphi 0, %s18
    %s21 = sphi 0, %s19
    %s22 = sphi 0, %s20
    %s23 = sphi 0, %s21
    %s35 = sphi 0, %s37
    %s38 = sphi 0, %s35
    %s39 = sphi 0, %s38
    %s55 = sphi 0, %s39
    %s63 = sphi 0, %s65
    %s66 = sphi 0, %s63
    %s67 = sphi 0, %s66
    %s83 = sphi 0, %s67
    %s87 = sphi 0, %s87
    %s89 = sphi 0, %s87
    %s90 = sphi 0, %s89
    %s104 = sphi 0, %s90
    %s112 = sphi 0, %s114
    %s115 = sphi 0, %s112
    %s116 = sphi 0, %s115
    %s132 = sphi 0, %s116
    %s140 = sphi 0, %s142
    %s143 = sphi 0, %s140
    %s144 = sphi 0, %s143
    %s160 = sphi 0, %s144
  $region4: #{_stft_layer_impl.1} parent=0 // loop_header_branch
    %14 = sbr.rel (%p12) target = $region8
  $region5: #{_stft_layer_impl.1} parent=0 // loop_body
    %s16 = ssub.s32 %s11, 1
    %s17 = ssub.s32 %s11, 2
    %s24 = sadd.s32 1, %s19
    %p25 = scmp.ge.s32.totalorder %s24, 1
    %s26 = scalar_select %p25, 0, %s24
    %s27 = sadd.s32 1, %s18
    %s28 = scalar_select %p25, %s27, %s18
    %p29 = scmp.ge.s32.totalorder %s28, 2
    %s30 = scalar_select %p29, 0, %s28
    %s31 = ssub.s32 %s18, %s30
    %s32 = ssub.s32 %s19, %s26
    %s33 = sor.u32 %s31, %s32
    %p34 = scmp.eq.s32.totalorder %s33, 0
    %s36 = sadd.s32 %s35, 1
    %s37 = scalar_select %p34, %s35, %s36
    %p40 = pneg %p34
    %p41 = scmp.eq.s32.totalorder %s11, 1
    %p42 = por %p40, %p41
    %p43 = scmp.ne.s32.totalorder %s35, %s38
    %p44 = scmp.eq.s32.totalorder %s11, 0
    %p45 = por %p43, %p44
    %p46 = scmp.ne.s32.totalorder %s35, %s38
    %p47 = scmp.eq.s32.totalorder %s16, 1
    %p48 = por %p46, %p47
    %p49 = scmp.ne.s32.totalorder %s38, %s39
    %p50 = scmp.eq.s32.totalorder %s16, 0
    %p51 = por %p49, %p50
    %p52 = scmp.ne.s32.totalorder %s38, %s39
    %p53 = scmp.eq.s32.totalorder %s17, 1
    %p54 = por %p52, %p53
    %p56 = scmp.ne.s32.totalorder %s39, %s55
    %p57 = scmp.eq.s32.totalorder %s17, 0
    %p58 = por %p56, %p57
    %s59 = ssub.s32 %s18, %s30
    %s60 = ssub.s32 %s19, %s26
    %s61 = sor.u32 %s59, %s60
    %p62 = scmp.eq.s32.totalorder %s61, 0
    %s64 = sadd.s32 %s63, 1
    %s65 = scalar_select %p62, %s63, %s64
    %p68 = pneg %p62
    %p69 = scmp.eq.s32.totalorder %s11, 1
    %p70 = por %p68, %p69
    %p71 = scmp.ne.s32.totalorder %s63, %s66
    %p72 = scmp.eq.s32.totalorder %s11, 0
    %p73 = por %p71, %p72
    %p74 = scmp.ne.s32.totalorder %s63, %s66
    %p75 = scmp.eq.s32.totalorder %s16, 1
    %p76 = por %p74, %p75
    %p77 = scmp.ne.s32.totalorder %s66, %s67
    %p78 = scmp.eq.s32.totalorder %s16, 0
    %p79 = por %p77, %p78
    %p80 = scmp.ne.s32.totalorder %s66, %s67
    %p81 = scmp.eq.s32.totalorder %s17, 1
    %p82 = por %p80, %p81
    %p84 = scmp.ne.s32.totalorder %s67, %s83
    %p85 = scmp.eq.s32.totalorder %s17, 0
    %p86 = por %p84, %p85
    %s88 = sadd.s32 %s87, 1
    %p91 = scmp.eq.s32.totalorder %s11, 1
    %p92 = scmp.ne.s32.totalorder %s87, %s89
    %p93 = scmp.eq.s32.totalorder %s11, 0
    %p94 = por %p92, %p93
    %p95 = scmp.ne.s32.totalorder %s87, %s89
    %p96 = scmp.eq.s32.totalorder %s16, 1
    %p97 = por %p95, %p96
    %p98 = scmp.ne.s32.totalorder %s89, %s90
    %p99 = scmp.eq.s32.totalorder %s16, 0
    %p100 = por %p98, %p99
    %p101 = scmp.ne.s32.totalorder %s89, %s90
    %p102 = scmp.eq.s32.totalorder %s17, 1
    %p103 = por %p101, %p102
    %p105 = scmp.ne.s32.totalorder %s90, %s104
    %p106 = scmp.eq.s32.totalorder %s17, 0
    %p107 = por %p105, %p106
    %s108 = ssub.s32 %s18, %s30
    %s109 = ssub.s32 %s19, %s26
    %s110 = sor.u32 %s108, %s109
    %p111 = scmp.eq.s32.totalorder %s110, 0
    %s113 = sadd.s32 %s112, 1
    %s114 = scalar_select %p111, %s112, %s113
    %p117 = pneg %p111
    %p118 = scmp.eq.s32.totalorder %s11, 1
    %p119 = por %p117, %p118
    %p120 = scmp.ne.s32.totalorder %s112, %s115
    %p121 = scmp.eq.s32.totalorder %s11, 0
    %p122 = por %p120, %p121
    %p123 = scmp.ne.s32.totalorder %s112, %s115
    %p124 = scmp.eq.s32.totalorder %s16, 1
    %p125 = por %p123, %p124
    %p126 = scmp.ne.s32.totalorder %s115, %s116
    %p127 = scmp.eq.s32.totalorder %s16, 0
    %p128 = por %p126, %p127
    %p129 = scmp.ne.s32.totalorder %s115, %s116
    %p130 = scmp.eq.s32.totalorder %s17, 1
    %p131 = por %p129, %p130
    %p133 = scmp.ne.s32.totalorder %s116, %s132
    %p134 = scmp.eq.s32.totalorder %s17, 0
    %p135 = por %p133, %p134
    %s136 = ssub.s32 %s18, %s30
    %s137 = ssub.s32 %s19, %s26
    %s138 = sor.u32 %s136, %s137
    %p139 = scmp.eq.s32.totalorder %s138, 0
    %s141 = sadd.s32 %s140, 1
    %s142 = scalar_select %p139, %s140, %s141
    %p145 = pneg %p139
    %p146 = scmp.eq.s32.totalorder %s11, 1
    %p147 = por %p145, %p146
    %p148 = scmp.ne.s32.totalorder %s140, %s143
    %p149 = scmp.eq.s32.totalorder %s11, 0
    %p150 = por %p148, %p149
    %p151 = scmp.ne.s32.totalorder %s140, %s143
    %p152 = scmp.eq.s32.totalorder %s16, 1
    %p153 = por %p151, %p152
    %p154 = scmp.ne.s32.totalorder %s143, %s144
    %p155 = scmp.eq.s32.totalorder %s16, 0
    %p156 = por %p154, %p155
    %p157 = scmp.ne.s32.totalorder %s143, %s144
    %p158 = scmp.eq.s32.totalorder %s17, 1
    %p159 = por %p157, %p158
    %p161 = scmp.ne.s32.totalorder %s144, %s160
    %p162 = scmp.eq.s32.totalorder %s17, 0
    %p163 = por %p161, %p162
    %p164 = scmp.le.s32.totalorder 1, %s11
    %p165 = scmp.lt.s32.totalorder %s11, 3
    %p166 = pnand %p164, %p165
    %p167 = pneg %p166
    // Predicated region
    $region9: #{_stft_layer_impl.1} parent=5 // pred_check
      _
    $region10: #{_stft_layer_impl.1} parent=5 // pred_check_branch
      %169 = sbr.rel (%p166) target = $region12
    $region11: #{_stft_layer_impl.1} parent=5 // pred_region
      %s170 = ssub.s32 %s11, 1
      // Predicated region
      $region13: #{_stft_layer_impl.1} parent=11 // pred_check
        %p171 = pneg %p100
      $region14: #{_stft_layer_impl.1} parent=11 // pred_check_branch
        %173 = sbr.rel (%p171) target = $region16
      $region15: #{_stft_layer_impl.1} parent=11 // pred_region
        _
      $region16: #{_stft_layer_impl.1} parent=11 // pred_fallthru
        _
    $region12: #{_stft_layer_impl.1} parent=5 // pred_fallthru
      _
    %p174 = scmp.lt.s32.totalorder %s11, 2
    // Predicated region
    $region17: #{_stft_layer_impl.1} parent=5 // pred_check
      %p175 = pneg %p174
    $region18: #{_stft_layer_impl.1} parent=5 // pred_check_branch
      %177 = sbr.rel (%p175) target = $region20
    $region19: #{_stft_layer_impl.1} parent=5 // pred_region
      // Predicated region
      $region21: #{_stft_layer_impl.1} parent=19 // pred_check
        %p178 = pneg %p45
      $region22: #{_stft_layer_impl.1} parent=19 // pred_check_branch
        %180 = sbr.rel (%p178) target = $region24
      $region23: #{_stft_layer_impl.1} parent=19 // pred_region
        %s181 = smul.u32 16, %s19
        %s182 = ssub.s32 17, %s181
        %p183 = scmp.lt.s32.totalorder %s182, 16
        %s184 = scalar_select %p183, %s182, 16
        %s185 = smul.u32 8, %s184
        %p186 = scmp.lt.s32.totalorder %s18, 1
        %s187 = scalar_select %p186, %s18, 1
        %p188 = scmp.lt.s32.totalorder %s181, 16
        %s189 = scalar_select %p188, %s181, 16
        %s190 = smul.addr %s187, 17
        %s191 = sadd.s32 %s189, %s190
        %s192 = smul.addr %s191, 8
        %s193 = scalar_lea.vmem %s0, %s192
        %s194 = smul.u32 16, %s19
        %s195 = ssub.s32 17, %s194
        %p196 = scmp.lt.s32.totalorder %s195, 16
        %s197 = scalar_select %p196, %s195, 16
        %s198 = smul.u32 8, %s197
      $region24: #{_stft_layer_impl.1} parent=19 // pred_fallthru
        _
      // Predicated region
      $region25: #{_stft_layer_impl.1} parent=19 // pred_check
        %p199 = pneg %p73
      $region26: #{_stft_layer_impl.1} parent=19 // pred_check_branch
        %201 = sbr.rel (%p199) target = $region28
      $region27: #{_stft_layer_impl.1} parent=19 // pred_region
        %p202 = scmp.lt.s32.totalorder %s18, 1
        %s203 = scalar_select %p202, %s18, 1
        %p204 = scmp.lt.s32.totalorder %s19, 0
        %s205 = scalar_select %p204, %s19, 0
        %s206 = sadd.s32 %s205, %s203
        %s207 = scalar_lea.vmem %s1, %s206
      $region28: #{_stft_layer_impl.1} parent=19 // pred_fallthru
        _
    $region20: #{_stft_layer_impl.1} parent=5 // pred_fallthru
      _
    %p208 = scmp.le.s32.totalorder 1, %s11
    %p209 = scmp.lt.s32.totalorder %s11, 3
    %p210 = pnand %p208, %p209
    %p211 = pneg %p210
    // Predicated region
    $region29: #{_stft_layer_impl.1} parent=5 // pred_check
      _
    $region30: #{_stft_layer_impl.1} parent=5 // pred_check_branch
      %213 = sbr.rel (%p210) target = $region32
    $region31: #{_stft_layer_impl.1} parent=5 // pred_region
      %s214 = ssub.s32 %s11, 1
      %s215 = smul.u32 16, %s21
      %s216 = ssub.s32 17, %s215
      %p217 = scmp.lt.s32.totalorder %s216, 16
      %s218 = scalar_select %p217, %s216, 16
      %s219 = smul.u32 8, %s218
      %p220 = scmp.lt.s32.totalorder %s20, 1
      %s221 = scalar_select %p220, %s20, 1
      %p222 = scmp.lt.s32.totalorder %s215, 16
      %s223 = scalar_select %p222, %s215, 16
      %s224 = smul.addr %s221, 17
      %s225 = sadd.s32 %s223, %s224
      %s226 = smul.addr %s225, 8
      %s227 = scalar_lea.vmem %s0, %s226
      %p228 = pneg %p51
      %p229 = pneg %p48
      %p230 = scmp.lt.s32.totalorder %s20, 1
      %s231 = scalar_select %p230, %s20, 1
      %p232 = scmp.lt.s32.totalorder %s21, 0
      %s233 = scalar_select %p232, %s21, 0
      %s234 = sadd.s32 %s233, %s231
      %s235 = scalar_lea.vmem %s1, %s234
      %p236 = pneg %p79
      %p237 = pneg %p76
      %p238 = pneg %p100
      %p239 = pneg %p97
      %p240 = pneg %p128
      %p241 = pneg %p125
      %p242 = scmp.lt.s32.totalorder %s20, 1
      %s243 = scalar_select %p242, %s20, 1
      %p244 = scmp.lt.s32.totalorder %s21, 0
      %s245 = scalar_select %p244, %s21, 0
      %s246 = smul.addr %s243, 5
      %s247 = sadd.s32 %s245, %s246
      %s248 = smul.addr %s247, 8
      %s249 = scalar_lea.vmem %s3, %s248
      %p250 = pneg %p156
      %p251 = pneg %p153
      %p252 = scmp.lt.s32.totalorder %s20, 1
      %s253 = scalar_select %p252, %s20, 1
      %p254 = scmp.lt.s32.totalorder %s21, 0
      %s255 = scalar_select %p254, %s21, 0
      %s256 = smul.addr %s253, 5
      %s257 = sadd.s32 %s255, %s256
      %s258 = smul.addr %s257, 8
      %s259 = scalar_lea.vmem %s4, %s258
      %s260 = smul.u32 16, %s21
      %s261 = ssub.s32 17, %s260
      %p262 = scmp.lt.s32.totalorder %s261, 16
      %s263 = scalar_select %p262, %s261, 16
      %s264 = smul.u32 8, %s263
      %p265 = scmp.lt.s32.totalorder %s20, 1
      %s266 = scalar_select %p265, %s20, 1
      %p267 = scmp.lt.s32.totalorder %s260, 16
      %s268 = scalar_select %p267, %s260, 16
      %s269 = smul.addr %s266, 17
      %s270 = sadd.s32 %s268, %s269
      %s271 = smul.addr %s270, 8
      %s272 = scalar_lea.vmem %s0, %s271
      %s273 = smul.u32 16, %s21
      %s274 = ssub.s32 17, %s273
      %p275 = scmp.lt.s32.totalorder %s274, 16
      %s276 = scalar_select %p275, %s274, 16
      %s277 = smul.u32 8, %s276
      %p278 = scmp.lt.s32.totalorder %s20, 1
      %s279 = scalar_select %p278, %s20, 1
      %p280 = scmp.lt.s32.totalorder %s21, 0
      %s281 = scalar_select %p280, %s21, 0
      %s282 = sadd.s32 %s281, %s279
      %s283 = scalar_lea.vmem %s1, %s282
      %p284 = scmp.lt.s32.totalorder %s20, 1
      %s285 = scalar_select %p284, %s20, 1
      %p286 = scmp.lt.s32.totalorder %s21, 0
      %s287 = scalar_select %p286, %s21, 0
      %s288 = smul.addr %s285, 5
      %s289 = sadd.s32 %s287, %s288
      %s290 = smul.addr %s289, 8
      %s291 = scalar_lea.vmem %s3, %s290
      %p292 = scmp.lt.s32.totalorder %s20, 1
      %s293 = scalar_select %p292, %s20, 1
      %p294 = scmp.lt.s32.totalorder %s21, 0
      %s295 = scalar_select %p294, %s21, 0
      %s296 = smul.addr %s293, 5
      %s297 = sadd.s32 %s295, %s296
      %s298 = smul.addr %s297, 8
      %s299 = scalar_lea.vmem %s4, %s298
      %v300 = vld [vmem:[%s272] sm:$0xff]
      %v301 = vld [vmem:[%s272 + $0x8] sm:$0xff]
      %v302 = vld [vmem:[%s272 + $0x10] sm:$0xff]
      %v303 = vld [vmem:[%s272 + $0x18] sm:$0xff]
      %v304 = vld [vmem:[%s272 + $0x20] sm:$0xff]
      %v305 = vld [vmem:[%s272 + $0x28] sm:$0xff]
      %v306 = vld [vmem:[%s272 + $0x30] sm:$0xff]
      %v307 = vld [vmem:[%s272 + $0x38] sm:$0xff]
      %v308 = vld [vmem:[%s272 + $0x40] sm:$0xff]
      %v309 = vld [vmem:[%s272 + $0x48] sm:$0xff]
      %v310 = vld [vmem:[%s272 + $0x50] sm:$0xff]
      %v311 = vld [vmem:[%s272 + $0x58] sm:$0xff]
      %v312 = vld [vmem:[%s272 + $0x60] sm:$0xff]
      %v313 = vld [vmem:[%s272 + $0x68] sm:$0xff]
      %v314 = vld [vmem:[%s272 + $0x70] sm:$0xff]
      %v315 = vld [vmem:[%s272 + $0x78] sm:$0xff]
      %v316 = vld [vmem:[%s283] sm:$0x1]
      %v317 = vld [vmem:[%s2] sm:$0xff]
      %v318 = vld [vmem:[%s2 + $0x8] sm:$0xff]
      %v319 = vld [vmem:[%s2 + $0x10] sm:$0xff]
      %v320 = vld [vmem:[%s2 + $0x18] sm:$0xff]
      %v321 = vld [vmem:[%s2 + $0x20] sm:$0xff]
      %v322 = vld [vmem:[%s2 + $0x28] sm:$0xff]
      %v323 = vld [vmem:[%s2 + $0x30] sm:$0xff]
      %v324 = vld [vmem:[%s2 + $0x38] sm:$0xff]
      %v325 = vld [vmem:[%s2 + $0x40] sm:$0xff]
      %v326 = vld [vmem:[%s2 + $0x48] sm:$0xff]
      %s327 = scalar_lea.vmem %s2, 80
      %v328 = vld [vmem:[%s327] sm:$0xff]
      %v329 = vld [vmem:[%s327 + $0x8] sm:$0xff]
      %v330 = vld [vmem:[%s327 + $0x10] sm:$0xff]
      %v331 = vld [vmem:[%s327 + $0x18] sm:$0xff]
      %v332 = vld [vmem:[%s327 + $0x20] sm:$0xff]
      %v333 = vld [vmem:[%s327 + $0x28] sm:$0xff]
      %v334 = vld [vmem:[%s327 + $0x30] sm:$0xff]
      %v335 = vld [vmem:[%s327 + $0x38] sm:$0xff]
      %v336 = vld [vmem:[%s327 + $0x40] sm:$0xff]
      %v337 = vld [vmem:[%s327 + $0x48] sm:$0xff]
      %vm355 = vcmask 1046528
      %v356 = vrot.slane %v300, 1
      %v357 = vrot.slane %v301, 1
      %v358 = vsel %vm355, %v356, %v357
      %v359 = vrot.slane %v302, 1
      %v360 = vsel %vm355, %v357, %v359
      %v361 = vrot.slane %v303, 1
      %v362 = vsel %vm355, %v359, %v361
      %v363 = vrot.slane %v304, 1
      %v364 = vsel %vm355, %v361, %v363
      %v365 = vrot.slane %v305, 1
      %v366 = vsel %vm355, %v363, %v365
      %v367 = vrot.slane %v306, 1
      %v368 = vsel %vm355, %v365, %v367
      %v369 = vrot.slane %v307, 1
      %v370 = vsel %vm355, %v367, %v369
      %v371 = vrot.slane %v308, 1
      %v372 = vsel %vm355, %v369, %v371
      %v373 = vrot.slane %v309, 1
      %v374 = vsel %vm355, %v371, %v373
      %v375 = vrot.slane %v310, 1
      %v376 = vsel %vm355, %v373, %v375
      %v377 = vrot.slane %v311, 1
      %v378 = vsel %vm355, %v375, %v377
      %v379 = vrot.slane %v312, 1
      %v380 = vsel %vm355, %v377, %v379
      %v381 = vrot.slane %v313, 1
      %v382 = vsel %vm355, %v379, %v381
      %v383 = vrot.slane %v314, 1
      %v384 = vsel %vm355, %v381, %v383
      %v385 = vrot.slane %v315, 1
      %v386 = vsel %vm355, %v383, %v385
      %v387 = vrot.slane %v316, 1
      %v388 = vsel %vm355, %v385, %v387
      %vm389 = vcmask 261120
      %v391 = vsel %vm389, %v328, 0
      %v394 = vsel %vm389, %v329, 0
      %v397 = vsel %vm389, %v330, 0
      %v400 = vsel %vm389, %v331, 0
      %v403 = vsel %vm389, %v332, 0
      %v406 = vsel %vm389, %v333, 0
      %v409 = vsel %vm389, %v334, 0
      %v412 = vsel %vm389, %v335, 0
      %v415 = vsel %vm389, %v336, 0
      %v418 = vsel %vm389, %v337, 0
      %v420 = vsel %vm389, %v358, 0
      %v422 = vsel %vm389, %v360, 0
      %v424 = vsel %vm389, %v362, 0
      %v426 = vsel %vm389, %v364, 0
      %v428 = vsel %vm389, %v366, 0
      %v430 = vsel %vm389, %v368, 0
      %v432 = vsel %vm389, %v370, 0
      %v434 = vsel %vm389, %v372, 0
      %v436 = vsel %vm389, %v374, 0
      %v438 = vsel %vm389, %v376, 0
      %v440 = vsel %vm389, %v378, 0
      %v442 = vsel %vm389, %v380, 0
      %v444 = vsel %vm389, %v382, 0
      %v446 = vsel %vm389, %v384, 0
      %v448 = vsel %vm389, %v386, 0
      %v450 = vsel %vm389, %v388, 0
      %v452 = vand.u32 %v450, 4294901760
      %453 = vmatpush.xpose.msra.mxu0 %v452
      %v454 = vand.u32 %v448, 4294901760
      %455 = vmatpush.xpose.msra.mxu0 %v454
      %v456 = vand.u32 %v446, 4294901760
      %457 = vmatpush.xpose.msra.mxu0 %v456
      %v458 = vand.u32 %v444, 4294901760
      %459 = vmatpush.xpose.msra.mxu0 %v458
      %v460 = vand.u32 %v442, 4294901760
      %461 = vmatpush.xpose.msra.mxu0 %v460
      %v462 = vand.u32 %v440, 4294901760
      %463 = vmatpush.xpose.msra.mxu0 %v462
      %v464 = vand.u32 %v438, 4294901760
      %465 = vmatpush.xpose.msra.mxu0 %v464
      %v466 = vand.u32 %v436, 4294901760
      %467 = vmatpush.xpose.msra.mxu0 %v466
      %v468 = vand.u32 %v434, 4294901760
      %469 = vmatpush.xpose.msra.mxu0 %v468
      %v470 = vand.u32 %v432, 4294901760
      %471 = vmatpush.xpose.msra.mxu0 %v470
      %v472 = vand.u32 %v430, 4294901760
      %473 = vmatpush.xpose.msra.mxu0 %v472
      %v474 = vand.u32 %v428, 4294901760
      %475 = vmatpush.xpose.msra.mxu0 %v474
      %v476 = vand.u32 %v426, 4294901760
      %477 = vmatpush.xpose.msra.mxu0 %v476
      %v478 = vand.u32 %v424, 4294901760
      %479 = vmatpush.xpose.msra.mxu0 %v478
      %v480 = vand.u32 %v422, 4294901760
      %481 = vmatpush.xpose.msra.mxu0 %v480
      %v482 = vand.u32 %v420, 4294901760
      %483 = vmatpush.xpose.msra.mxu0 %v482
      %v484 = vand.u32 %v391, 4294901760
      %v485 = vsub.f32 %v391, %v484
      %v486 = vand.u32 %v485, 4294901760
      %v487 = vsub.f32 %v485, %v486
      %v488 = vand.u32 %v487, 4294901760
      %489 = vmatmul.f32.gmra.mxu0 %v488
      %v490 = vpop.f32.mrf.mxu0
      %v491 = vadd.f32 0.0, %v490
      %v492 = vand.u32 %v394, 4294901760
      %v493 = vsub.f32 %v394, %v492
      %v494 = vand.u32 %v493, 4294901760
      %v495 = vsub.f32 %v493, %v494
      %v496 = vand.u32 %v495, 4294901760
      %497 = vmatmul.f32.gmra.mxu0 %v496
      %v498 = vpop.f32.mrf.mxu0
      %v499 = vadd.f32 0.0, %v498
      %v500 = vand.u32 %v397, 4294901760
      %v501 = vsub.f32 %v397, %v500
      %v502 = vand.u32 %v501, 4294901760
      %v503 = vsub.f32 %v501, %v502
      %v504 = vand.u32 %v503, 4294901760
      %505 = vmatmul.f32.gmra.mxu0 %v504
      %v506 = vpop.f32.mrf.mxu0
      %v507 = vadd.f32 0.0, %v506
      %v508 = vand.u32 %v400, 4294901760
      %v509 = vsub.f32 %v400, %v508
      %v510 = vand.u32 %v509, 4294901760
      %v511 = vsub.f32 %v509, %v510
      %v512 = vand.u32 %v511, 4294901760
      %513 = vmatmul.f32.gmra.mxu0 %v512
      %v514 = vpop.f32.mrf.mxu0
      %v515 = vadd.f32 0.0, %v514
      %v516 = vand.u32 %v403, 4294901760
      %v517 = vsub.f32 %v403, %v516
      %v518 = vand.u32 %v517, 4294901760
      %v519 = vsub.f32 %v517, %v518
      %v520 = vand.u32 %v519, 4294901760
      %521 = vmatmul.f32.gmra.mxu0 %v520
      %v522 = vpop.f32.mrf.mxu0
      %v523 = vadd.f32 0.0, %v522
      %v524 = vand.u32 %v406, 4294901760
      %v525 = vsub.f32 %v406, %v524
      %v526 = vand.u32 %v525, 4294901760
      %v527 = vsub.f32 %v525, %v526
      %v528 = vand.u32 %v527, 4294901760
      %529 = vmatmul.f32.gmra.mxu0 %v528
      %v530 = vpop.f32.mrf.mxu0
      %v531 = vadd.f32 0.0, %v530
      %v532 = vand.u32 %v409, 4294901760
      %v533 = vsub.f32 %v409, %v532
      %v534 = vand.u32 %v533, 4294901760
      %v535 = vsub.f32 %v533, %v534
      %v536 = vand.u32 %v535, 4294901760
      %537 = vmatmul.f32.gmra.mxu0 %v536
      %v538 = vpop.f32.mrf.mxu0
      %v539 = vadd.f32 0.0, %v538
      %v540 = vand.u32 %v412, 4294901760
      %v541 = vsub.f32 %v412, %v540
      %v542 = vand.u32 %v541, 4294901760
      %v543 = vsub.f32 %v541, %v542
      %v544 = vand.u32 %v543, 4294901760
      %545 = vmatmul.f32.gmra.mxu0 %v544
      %v546 = vpop.f32.mrf.mxu0
      %v547 = vadd.f32 0.0, %v546
      %v548 = vand.u32 %v415, 4294901760
      %v549 = vsub.f32 %v415, %v548
      %v550 = vand.u32 %v549, 4294901760
      %v551 = vsub.f32 %v549, %v550
      %v552 = vand.u32 %v551, 4294901760
      %553 = vmatmul.f32.gmra.mxu0 %v552
      %v554 = vpop.f32.mrf.mxu0
      %v555 = vadd.f32 0.0, %v554
      %v556 = vand.u32 %v418, 4294901760
      %v557 = vsub.f32 %v418, %v556
      %v558 = vand.u32 %v557, 4294901760
      %v559 = vsub.f32 %v557, %v558
      %v560 = vand.u32 %v559, 4294901760
      %561 = vmatmul.f32.gmra.mxu0 %v560
      %v562 = vpop.f32.mrf.mxu0
      %v563 = vadd.f32 0.0, %v562
      %564 = vdwg.mxu0
      %v565 = vand.u32 %v450, 4294901760
      %v566 = vsub.f32 %v450, %v565
      %v567 = vand.u32 %v566, 4294901760
      %v568 = vsub.f32 %v566, %v567
      %v569 = vand.u32 %v568, 4294901760
      %570 = vmatpush.xpose.msra.mxu0 %v569
      %v571 = vand.u32 %v448, 4294901760
      %v572 = vsub.f32 %v448, %v571
      %v573 = vand.u32 %v572, 4294901760
      %v574 = vsub.f32 %v572, %v573
      %v575 = vand.u32 %v574, 4294901760
      %576 = vmatpush.xpose.msra.mxu0 %v575
      %v577 = vand.u32 %v446, 4294901760
      %v578 = vsub.f32 %v446, %v577
      %v579 = vand.u32 %v578, 4294901760
      %v580 = vsub.f32 %v578, %v579
      %v581 = vand.u32 %v580, 4294901760
      %582 = vmatpush.xpose.msra.mxu0 %v581
      %v583 = vand.u32 %v444, 4294901760
      %v584 = vsub.f32 %v444, %v583
      %v585 = vand.u32 %v584, 4294901760
      %v586 = vsub.f32 %v584, %v585
      %v587 = vand.u32 %v586, 4294901760
      %588 = vmatpush.xpose.msra.mxu0 %v587
      %v589 = vand.u32 %v442, 4294901760
      %v590 = vsub.f32 %v442, %v589
      %v591 = vand.u32 %v590, 4294901760
      %v592 = vsub.f32 %v590, %v591
      %v593 = vand.u32 %v592, 4294901760
      %594 = vmatpush.xpose.msra.mxu0 %v593
      %v595 = vand.u32 %v440, 4294901760
      %v596 = vsub.f32 %v440, %v595
      %v597 = vand.u32 %v596, 4294901760
      %v598 = vsub.f32 %v596, %v597
      %v599 = vand.u32 %v598, 4294901760
      %600 = vmatpush.xpose.msra.mxu0 %v599
      %v601 = vand.u32 %v438, 4294901760
      %v602 = vsub.f32 %v438, %v601
      %v603 = vand.u32 %v602, 4294901760
      %v604 = vsub.f32 %v602, %v603
      %v605 = vand.u32 %v604, 4294901760
      %606 = vmatpush.xpose.msra.mxu0 %v605
      %v607 = vand.u32 %v436, 4294901760
      %v608 = vsub.f32 %v436, %v607
      %v609 = vand.u32 %v608, 4294901760
      %v610 = vsub.f32 %v608, %v609
      %v611 = vand.u32 %v610, 4294901760
      %612 = vmatpush.xpose.msra.mxu0 %v611
      %v613 = vand.u32 %v434, 4294901760
      %v614 = vsub.f32 %v434, %v613
      %v615 = vand.u32 %v614, 4294901760
      %v616 = vsub.f32 %v614, %v615
      %v617 = vand.u32 %v616, 4294901760
      %618 = vmatpush.xpose.msra.mxu0 %v617
      %v619 = vand.u32 %v432, 4294901760
      %v620 = vsub.f32 %v432, %v619
      %v621 = vand.u32 %v620, 4294901760
      %v622 = vsub.f32 %v620, %v621
      %v623 = vand.u32 %v622, 4294901760
      %624 = vmatpush.xpose.msra.mxu0 %v623
      %v625 = vand.u32 %v430, 4294901760
      %v626 = vsub.f32 %v430, %v625
      %v627 = vand.u32 %v626, 4294901760
      %v628 = vsub.f32 %v626, %v627
      %v629 = vand.u32 %v628, 4294901760
      %630 = vmatpush.xpose.msra.mxu0 %v629
      %v631 = vand.u32 %v428, 4294901760
      %v632 = vsub.f32 %v428, %v631
      %v633 = vand.u32 %v632, 4294901760
      %v634 = vsub.f32 %v632, %v633
      %v635 = vand.u32 %v634, 4294901760
      %636 = vmatpush.xpose.msra.mxu0 %v635
      %v637 = vand.u32 %v426, 4294901760
      %v638 = vsub.f32 %v426, %v637
      %v639 = vand.u32 %v638, 4294901760
      %v640 = vsub.f32 %v638, %v639
      %v641 = vand.u32 %v640, 4294901760
      %642 = vmatpush.xpose.msra.mxu0 %v641
      %v643 = vand.u32 %v424, 4294901760
      %v644 = vsub.f32 %v424, %v643
      %v645 = vand.u32 %v644, 4294901760
      %v646 = vsub.f32 %v644, %v645
      %v647 = vand.u32 %v646, 4294901760
      %648 = vmatpush.xpose.msra.mxu0 %v647
      %v649 = vand.u32 %v422, 4294901760
      %v650 = vsub.f32 %v422, %v649
      %v651 = vand.u32 %v650, 4294901760
      %v652 = vsub.f32 %v650, %v651
      %v653 = vand.u32 %v652, 4294901760
      %654 = vmatpush.xpose.msra.mxu0 %v653
      %v655 = vand.u32 %v420, 4294901760
      %v656 = vsub.f32 %v420, %v655
      %v657 = vand.u32 %v656, 4294901760
      %v658 = vsub.f32 %v656, %v657
      %v659 = vand.u32 %v658, 4294901760
      %660 = vmatpush.xpose.msra.mxu0 %v659
      %v661 = vand.u32 %v391, 4294901760
      %662 = vmatmul.f32.gmra.mxu0 %v661
      %v663 = vpop.f32.mrf.mxu0
      %v664 = vadd.f32 %v491, %v663
      %v665 = vand.u32 %v394, 4294901760
      %666 = vmatmul.f32.gmra.mxu0 %v665
      %v667 = vpop.f32.mrf.mxu0
      %v668 = vadd.f32 %v499, %v667
      %v669 = vand.u32 %v397, 4294901760
      %670 = vmatmul.f32.gmra.mxu0 %v669
      %v671 = vpop.f32.mrf.mxu0
      %v672 = vadd.f32 %v507, %v671
      %v673 = vand.u32 %v400, 4294901760
      %674 = vmatmul.f32.gmra.mxu0 %v673
      %v675 = vpop.f32.mrf.mxu0
      %v676 = vadd.f32 %v515, %v675
      %v677 = vand.u32 %v403, 4294901760
      %678 = vmatmul.f32.gmra.mxu0 %v677
      %v679 = vpop.f32.mrf.mxu0
      %v680 = vadd.f32 %v523, %v679
      %v681 = vand.u32 %v406, 4294901760
      %682 = vmatmul.f32.gmra.mxu0 %v681
      %v683 = vpop.f32.mrf.mxu0
      %v684 = vadd.f32 %v531, %v683
      %v685 = vand.u32 %v409, 4294901760
      %686 = vmatmul.f32.gmra.mxu0 %v685
      %v687 = vpop.f32.mrf.mxu0
      %v688 = vadd.f32 %v539, %v687
      %v689 = vand.u32 %v412, 4294901760
      %690 = vmatmul.f32.gmra.mxu0 %v689
      %v691 = vpop.f32.mrf.mxu0
      %v692 = vadd.f32 %v547, %v691
      %v693 = vand.u32 %v415, 4294901760
      %694 = vmatmul.f32.gmra.mxu0 %v693
      %v695 = vpop.f32.mrf.mxu0
      %v696 = vadd.f32 %v555, %v695
      %v697 = vand.u32 %v418, 4294901760
      %698 = vmatmul.f32.gmra.mxu0 %v697
      %v699 = vpop.f32.mrf.mxu0
      %v700 = vadd.f32 %v563, %v699
      %701 = vdwg.mxu0
      %v702 = vand.u32 %v450, 4294901760
      %v703 = vsub.f32 %v450, %v702
      %704 = vmatpush.xpose.msra.mxu0 %v703
      %v705 = vand.u32 %v448, 4294901760
      %v706 = vsub.f32 %v448, %v705
      %707 = vmatpush.xpose.msra.mxu0 %v706
      %v708 = vand.u32 %v446, 4294901760
      %v709 = vsub.f32 %v446, %v708
      %710 = vmatpush.xpose.msra.mxu0 %v709
      %v711 = vand.u32 %v444, 4294901760
      %v712 = vsub.f32 %v444, %v711
      %713 = vmatpush.xpose.msra.mxu0 %v712
      %v714 = vand.u32 %v442, 4294901760
      %v715 = vsub.f32 %v442, %v714
      %716 = vmatpush.xpose.msra.mxu0 %v715
      %v717 = vand.u32 %v440, 4294901760
      %v718 = vsub.f32 %v440, %v717
      %719 = vmatpush.xpose.msra.mxu0 %v718
      %v720 = vand.u32 %v438, 4294901760
      %v721 = vsub.f32 %v438, %v720
      %722 = vmatpush.xpose.msra.mxu0 %v721
      %v723 = vand.u32 %v436, 4294901760
      %v724 = vsub.f32 %v436, %v723
      %725 = vmatpush.xpose.msra.mxu0 %v724
      %v726 = vand.u32 %v434, 4294901760
      %v727 = vsub.f32 %v434, %v726
      %728 = vmatpush.xpose.msra.mxu0 %v727
      %v729 = vand.u32 %v432, 4294901760
      %v730 = vsub.f32 %v432, %v729
      %731 = vmatpush.xpose.msra.mxu0 %v730
      %v732 = vand.u32 %v430, 4294901760
      %v733 = vsub.f32 %v430, %v732
      %734 = vmatpush.xpose.msra.mxu0 %v733
      %v735 = vand.u32 %v428, 4294901760
      %v736 = vsub.f32 %v428, %v735
      %737 = vmatpush.xpose.msra.mxu0 %v736
      %v738 = vand.u32 %v426, 4294901760
      %v739 = vsub.f32 %v426, %v738
      %740 = vmatpush.xpose.msra.mxu0 %v739
      %v741 = vand.u32 %v424, 4294901760
      %v742 = vsub.f32 %v424, %v741
      %743 = vmatpush.xpose.msra.mxu0 %v742
      %v744 = vand.u32 %v422, 4294901760
      %v745 = vsub.f32 %v422, %v744
      %746 = vmatpush.xpose.msra.mxu0 %v745
      %v747 = vand.u32 %v420, 4294901760
      %v748 = vsub.f32 %v420, %v747
      %749 = vmatpush.xpose.msra.mxu0 %v748
      %v750 = vand.u32 %v391, 4294901760
      %v751 = vsub.f32 %v391, %v750
      %752 = vmatmul.f32.gmra.mxu0 %v751
      %v753 = vpop.f32.mrf.mxu0
      %v754 = vadd.f32 %v664, %v753
      %v755 = vand.u32 %v394, 4294901760
      %v756 = vsub.f32 %v394, %v755
      %757 = vmatmul.f32.gmra.mxu0 %v756
      %v758 = vpop.f32.mrf.mxu0
      %v759 = vadd.f32 %v668, %v758
      %v760 = vand.u32 %v397, 4294901760
      %v761 = vsub.f32 %v397, %v760
      %762 = vmatmul.f32.gmra.mxu0 %v761
      %v763 = vpop.f32.mrf.mxu0
      %v764 = vadd.f32 %v672, %v763
      %v765 = vand.u32 %v400, 4294901760
      %v766 = vsub.f32 %v400, %v765
      %767 = vmatmul.f32.gmra.mxu0 %v766
      %v768 = vpop.f32.mrf.mxu0
      %v769 = vadd.f32 %v676, %v768
      %v770 = vand.u32 %v403, 4294901760
      %v771 = vsub.f32 %v403, %v770
      %772 = vmatmul.f32.gmra.mxu0 %v771
      %v773 = vpop.f32.mrf.mxu0
      %v774 = vadd.f32 %v680, %v773
      %v775 = vand.u32 %v406, 4294901760
      %v776 = vsub.f32 %v406, %v775
      %777 = vmatmul.f32.gmra.mxu0 %v776
      %v778 = vpop.f32.mrf.mxu0
      %v779 = vadd.f32 %v684, %v778
      %v780 = vand.u32 %v409, 4294901760
      %v781 = vsub.f32 %v409, %v780
      %782 = vmatmul.f32.gmra.mxu0 %v781
      %v783 = vpop.f32.mrf.mxu0
      %v784 = vadd.f32 %v688, %v783
      %v785 = vand.u32 %v412, 4294901760
      %v786 = vsub.f32 %v412, %v785
      %787 = vmatmul.f32.gmra.mxu0 %v786
      %v788 = vpop.f32.mrf.mxu0
      %v789 = vadd.f32 %v692, %v788
      %v790 = vand.u32 %v415, 4294901760
      %v791 = vsub.f32 %v415, %v790
      %792 = vmatmul.f32.gmra.mxu0 %v791
      %v793 = vpop.f32.mrf.mxu0
      %v794 = vadd.f32 %v696, %v793
      %v795 = vand.u32 %v418, 4294901760
      %v796 = vsub.f32 %v418, %v795
      %797 = vmatmul.f32.gmra.mxu0 %v796
      %v798 = vpop.f32.mrf.mxu0
      %v799 = vadd.f32 %v700, %v798
      %800 = vdwg.mxu0
      %v801 = vand.u32 %v450, 4294901760
      %802 = vmatpush.xpose.msra.mxu0 %v801
      %v803 = vand.u32 %v448, 4294901760
      %804 = vmatpush.xpose.msra.mxu0 %v803
      %v805 = vand.u32 %v446, 4294901760
      %806 = vmatpush.xpose.msra.mxu0 %v805
      %v807 = vand.u32 %v444, 4294901760
      %808 = vmatpush.xpose.msra.mxu0 %v807
      %v809 = vand.u32 %v442, 4294901760
      %810 = vmatpush.xpose.msra.mxu0 %v809
      %v811 = vand.u32 %v440, 4294901760
      %812 = vmatpush.xpose.msra.mxu0 %v811
      %v813 = vand.u32 %v438, 4294901760
      %814 = vmatpush.xpose.msra.mxu0 %v813
      %v815 = vand.u32 %v436, 4294901760
      %816 = vmatpush.xpose.msra.mxu0 %v815
      %v817 = vand.u32 %v434, 4294901760
      %818 = vmatpush.xpose.msra.mxu0 %v817
      %v819 = vand.u32 %v432, 4294901760
      %820 = vmatpush.xpose.msra.mxu0 %v819
      %v821 = vand.u32 %v430, 4294901760
      %822 = vmatpush.xpose.msra.mxu0 %v821
      %v823 = vand.u32 %v428, 4294901760
      %824 = vmatpush.xpose.msra.mxu0 %v823
      %v825 = vand.u32 %v426, 4294901760
      %826 = vmatpush.xpose.msra.mxu0 %v825
      %v827 = vand.u32 %v424, 4294901760
      %828 = vmatpush.xpose.msra.mxu0 %v827
      %v829 = vand.u32 %v422, 4294901760
      %830 = vmatpush.xpose.msra.mxu0 %v829
      %v831 = vand.u32 %v420, 4294901760
      %832 = vmatpush.xpose.msra.mxu0 %v831
      %v833 = vand.u32 %v391, 4294901760
      %v834 = vsub.f32 %v391, %v833
      %v835 = vand.u32 %v834, 4294901760
      %836 = vmatmul.f32.gmra.mxu0 %v835
      %v837 = vpop.f32.mrf.mxu0
      %v838 = vadd.f32 %v754, %v837
      %v839 = vand.u32 %v394, 4294901760
      %v840 = vsub.f32 %v394, %v839
      %v841 = vand.u32 %v840, 4294901760
      %842 = vmatmul.f32.gmra.mxu0 %v841
      %v843 = vpop.f32.mrf.mxu0
      %v844 = vadd.f32 %v759, %v843
      %v845 = vand.u32 %v397, 4294901760
      %v846 = vsub.f32 %v397, %v845
      %v847 = vand.u32 %v846, 4294901760
      %848 = vmatmul.f32.gmra.mxu0 %v847
      %v849 = vpop.f32.mrf.mxu0
      %v850 = vadd.f32 %v764, %v849
      %v851 = vand.u32 %v400, 4294901760
      %v852 = vsub.f32 %v400, %v851
      %v853 = vand.u32 %v852, 4294901760
      %854 = vmatmul.f32.gmra.mxu0 %v853
      %v855 = vpop.f32.mrf.mxu0
      %v856 = vadd.f32 %v769, %v855
      %v857 = vand.u32 %v403, 4294901760
      %v858 = vsub.f32 %v403, %v857
      %v859 = vand.u32 %v858, 4294901760
      %860 = vmatmul.f32.gmra.mxu0 %v859
      %v861 = vpop.f32.mrf.mxu0
      %v862 = vadd.f32 %v774, %v861
      %v863 = vand.u32 %v406, 4294901760
      %v864 = vsub.f32 %v406, %v863
      %v865 = vand.u32 %v864, 4294901760
      %866 = vmatmul.f32.gmra.mxu0 %v865
      %v867 = vpop.f32.mrf.mxu0
      %v868 = vadd.f32 %v779, %v867
      %v869 = vand.u32 %v409, 4294901760
      %v870 = vsub.f32 %v409, %v869
      %v871 = vand.u32 %v870, 4294901760
      %872 = vmatmul.f32.gmra.mxu0 %v871
      %v873 = vpop.f32.mrf.mxu0
      %v874 = vadd.f32 %v784, %v873
      %v875 = vand.u32 %v412, 4294901760
      %v876 = vsub.f32 %v412, %v875
      %v877 = vand.u32 %v876, 4294901760
      %878 = vmatmul.f32.gmra.mxu0 %v877
      %v879 = vpop.f32.mrf.mxu0
      %v880 = vadd.f32 %v789, %v879
      %v881 = vand.u32 %v415, 4294901760
      %v882 = vsub.f32 %v415, %v881
      %v883 = vand.u32 %v882, 4294901760
      %884 = vmatmul.f32.gmra.mxu0 %v883
      %v885 = vpop.f32.mrf.mxu0
      %v886 = vadd.f32 %v794, %v885
      %v887 = vand.u32 %v418, 4294901760
      %v888 = vsub.f32 %v418, %v887
      %v889 = vand.u32 %v888, 4294901760
      %890 = vmatmul.f32.gmra.mxu0 %v889
      %v891 = vpop.f32.mrf.mxu0
      %v892 = vadd.f32 %v799, %v891
      %893 = vdwg.mxu0
      %v894 = vand.u32 %v450, 4294901760
      %v895 = vsub.f32 %v450, %v894
      %v896 = vand.u32 %v895, 4294901760
      %897 = vmatpush.xpose.msra.mxu0 %v896
      %v898 = vand.u32 %v448, 4294901760
      %v899 = vsub.f32 %v448, %v898
      %v900 = vand.u32 %v899, 4294901760
      %901 = vmatpush.xpose.msra.mxu0 %v900
      %v902 = vand.u32 %v446, 4294901760
      %v903 = vsub.f32 %v446, %v902
      %v904 = vand.u32 %v903, 4294901760
      %905 = vmatpush.xpose.msra.mxu0 %v904
      %v906 = vand.u32 %v444, 4294901760
      %v907 = vsub.f32 %v444, %v906
      %v908 = vand.u32 %v907, 4294901760
      %909 = vmatpush.xpose.msra.mxu0 %v908
      %v910 = vand.u32 %v442, 4294901760
      %v911 = vsub.f32 %v442, %v910
      %v912 = vand.u32 %v911, 4294901760
      %913 = vmatpush.xpose.msra.mxu0 %v912
      %v914 = vand.u32 %v440, 4294901760
      %v915 = vsub.f32 %v440, %v914
      %v916 = vand.u32 %v915, 4294901760
      %917 = vmatpush.xpose.msra.mxu0 %v916
      %v918 = vand.u32 %v438, 4294901760
      %v919 = vsub.f32 %v438, %v918
      %v920 = vand.u32 %v919, 4294901760
      %921 = vmatpush.xpose.msra.mxu0 %v920
      %v922 = vand.u32 %v436, 4294901760
      %v923 = vsub.f32 %v436, %v922
      %v924 = vand.u32 %v923, 4294901760
      %925 = vmatpush.xpose.msra.mxu0 %v924
      %v926 = vand.u32 %v434, 4294901760
      %v927 = vsub.f32 %v434, %v926
      %v928 = vand.u32 %v927, 4294901760
      %929 = vmatpush.xpose.msra.mxu0 %v928
      %v930 = vand.u32 %v432, 4294901760
      %v931 = vsub.f32 %v432, %v930
      %v932 = vand.u32 %v931, 4294901760
      %933 = vmatpush.xpose.msra.mxu0 %v932
      %v934 = vand.u32 %v430, 4294901760
      %v935 = vsub.f32 %v430, %v934
      %v936 = vand.u32 %v935, 4294901760
      %937 = vmatpush.xpose.msra.mxu0 %v936
      %v938 = vand.u32 %v428, 4294901760
      %v939 = vsub.f32 %v428, %v938
      %v940 = vand.u32 %v939, 4294901760
      %941 = vmatpush.xpose.msra.mxu0 %v940
      %v942 = vand.u32 %v426, 4294901760
      %v943 = vsub.f32 %v426, %v942
      %v944 = vand.u32 %v943, 4294901760
      %945 = vmatpush.xpose.msra.mxu0 %v944
      %v946 = vand.u32 %v424, 4294901760
      %v947 = vsub.f32 %v424, %v946
      %v948 = vand.u32 %v947, 4294901760
      %949 = vmatpush.xpose.msra.mxu0 %v948
      %v950 = vand.u32 %v422, 4294901760
      %v951 = vsub.f32 %v422, %v950
      %v952 = vand.u32 %v951, 4294901760
      %953 = vmatpush.xpose.msra.mxu0 %v952
      %v954 = vand.u32 %v420, 4294901760
      %v955 = vsub.f32 %v420, %v954
      %v956 = vand.u32 %v955, 4294901760
      %957 = vmatpush.xpose.msra.mxu0 %v956
      %v958 = vand.u32 %v391, 4294901760
      %959 = vmatmul.f32.gmra.mxu0 %v958
      %v960 = vpop.f32.mrf.mxu0
      %v961 = vadd.f32 %v838, %v960
      %v962 = vand.u32 %v394, 4294901760
      %963 = vmatmul.f32.gmra.mxu0 %v962
      %v964 = vpop.f32.mrf.mxu0
      %v965 = vadd.f32 %v844, %v964
      %v966 = vand.u32 %v397, 4294901760
      %967 = vmatmul.f32.gmra.mxu0 %v966
      %v968 = vpop.f32.mrf.mxu0
      %v969 = vadd.f32 %v850, %v968
      %v970 = vand.u32 %v400, 4294901760
      %971 = vmatmul.f32.gmra.mxu0 %v970
      %v972 = vpop.f32.mrf.mxu0
      %v973 = vadd.f32 %v856, %v972
      %v974 = vand.u32 %v403, 4294901760
      %975 = vmatmul.f32.gmra.mxu0 %v974
      %v976 = vpop.f32.mrf.mxu0
      %v977 = vadd.f32 %v862, %v976
      %v978 = vand.u32 %v406, 4294901760
      %979 = vmatmul.f32.gmra.mxu0 %v978
      %v980 = vpop.f32.mrf.mxu0
      %v981 = vadd.f32 %v868, %v980
      %v982 = vand.u32 %v409, 4294901760
      %983 = vmatmul.f32.gmra.mxu0 %v982
      %v984 = vpop.f32.mrf.mxu0
      %v985 = vadd.f32 %v874, %v984
      %v986 = vand.u32 %v412, 4294901760
      %987 = vmatmul.f32.gmra.mxu0 %v986
      %v988 = vpop.f32.mrf.mxu0
      %v989 = vadd.f32 %v880, %v988
      %v990 = vand.u32 %v415, 4294901760
      %991 = vmatmul.f32.gmra.mxu0 %v990
      %v992 = vpop.f32.mrf.mxu0
      %v993 = vadd.f32 %v886, %v992
      %v994 = vand.u32 %v418, 4294901760
      %995 = vmatmul.f32.gmra.mxu0 %v994
      %v996 = vpop.f32.mrf.mxu0
      %v997 = vadd.f32 %v892, %v996
      %998 = vdwg.mxu0
      %v999 = vand.u32 %v450, 4294901760
      %1000 = vmatpush.xpose.msra.mxu0 %v999
      %v1001 = vand.u32 %v448, 4294901760
      %1002 = vmatpush.xpose.msra.mxu0 %v1001
      %v1003 = vand.u32 %v446, 4294901760
      %1004 = vmatpush.xpose.msra.mxu0 %v1003
      %v1005 = vand.u32 %v444, 4294901760
      %1006 = vmatpush.xpose.msra.mxu0 %v1005
      %v1007 = vand.u32 %v442, 4294901760
      %1008 = vmatpush.xpose.msra.mxu0 %v1007
      %v1009 = vand.u32 %v440, 4294901760
      %1010 = vmatpush.xpose.msra.mxu0 %v1009
      %v1011 = vand.u32 %v438, 4294901760
      %1012 = vmatpush.xpose.msra.mxu0 %v1011
      %v1013 = vand.u32 %v436, 4294901760
      %1014 = vmatpush.xpose.msra.mxu0 %v1013
      %v1015 = vand.u32 %v434, 4294901760
      %1016 = vmatpush.xpose.msra.mxu0 %v1015
      %v1017 = vand.u32 %v432, 4294901760
      %1018 = vmatpush.xpose.msra.mxu0 %v1017
      %v1019 = vand.u32 %v430, 4294901760
      %1020 = vmatpush.xpose.msra.mxu0 %v1019
      %v1021 = vand.u32 %v428, 4294901760
      %1022 = vmatpush.xpose.msra.mxu0 %v1021
      %v1023 = vand.u32 %v426, 4294901760
      %1024 = vmatpush.xpose.msra.mxu0 %v1023
      %v1025 = vand.u32 %v424, 4294901760
      %1026 = vmatpush.xpose.msra.mxu0 %v1025
      %v1027 = vand.u32 %v422, 4294901760
      %1028 = vmatpush.xpose.msra.mxu0 %v1027
      %v1029 = vand.u32 %v420, 4294901760
      %1030 = vmatpush.xpose.msra.mxu0 %v1029
      %v1031 = vand.u32 %v391, 4294901760
      %1032 = vmatmul.f32.gmra.mxu0 %v1031
      %v1033 = vpop.f32.mrf.mxu0
      %v1034 = vadd.f32 %v961, %v1033
      %v1035 = vand.u32 %v394, 4294901760
      %1036 = vmatmul.f32.gmra.mxu0 %v1035
      %v1037 = vpop.f32.mrf.mxu0
      %v1038 = vadd.f32 %v965, %v1037
      %v1039 = vand.u32 %v397, 4294901760
      %1040 = vmatmul.f32.gmra.mxu0 %v1039
      %v1041 = vpop.f32.mrf.mxu0
      %v1042 = vadd.f32 %v969, %v1041
      %v1043 = vand.u32 %v400, 4294901760
      %1044 = vmatmul.f32.gmra.mxu0 %v1043
      %v1045 = vpop.f32.mrf.mxu0
      %v1046 = vadd.f32 %v973, %v1045
      %v1047 = vand.u32 %v403, 4294901760
      %1048 = vmatmul.f32.gmra.mxu0 %v1047
      %v1049 = vpop.f32.mrf.mxu0
      %v1050 = vadd.f32 %v977, %v1049
      %v1051 = vand.u32 %v406, 4294901760
      %1052 = vmatmul.f32.gmra.mxu0 %v1051
      %v1053 = vpop.f32.mrf.mxu0
      %v1054 = vadd.f32 %v981, %v1053
      %v1055 = vand.u32 %v409, 4294901760
      %1056 = vmatmul.f32.gmra.mxu0 %v1055
      %v1057 = vpop.f32.mrf.mxu0
      %v1058 = vadd.f32 %v985, %v1057
      %v1059 = vand.u32 %v412, 4294901760
      %1060 = vmatmul.f32.gmra.mxu0 %v1059
      %v1061 = vpop.f32.mrf.mxu0
      %v1062 = vadd.f32 %v989, %v1061
      %v1063 = vand.u32 %v415, 4294901760
      %1064 = vmatmul.f32.gmra.mxu0 %v1063
      %v1065 = vpop.f32.mrf.mxu0
      %v1066 = vadd.f32 %v993, %v1065
      %v1067 = vand.u32 %v418, 4294901760
      %1068 = vmatmul.f32.gmra.mxu0 %v1067
      %v1069 = vpop.f32.mrf.mxu0
      %v1070 = vadd.f32 %v997, %v1069
      %1071 = vdwg.mxu0
      %v1073 = vsel %vm389, %v317, 0
      %v1076 = vsel %vm389, %v318, 0
      %v1079 = vsel %vm389, %v319, 0
      %v1082 = vsel %vm389, %v320, 0
      %v1085 = vsel %vm389, %v321, 0
      %v1088 = vsel %vm389, %v322, 0
      %v1091 = vsel %vm389, %v323, 0
      %v1094 = vsel %vm389, %v324, 0
      %v1097 = vsel %vm389, %v325, 0
      %v1100 = vsel %vm389, %v326, 0
      %v1102 = vsel %vm389, %v300, 0
      %v1104 = vsel %vm389, %v301, 0
      %v1106 = vsel %vm389, %v302, 0
      %v1108 = vsel %vm389, %v303, 0
      %v1110 = vsel %vm389, %v304, 0
      %v1112 = vsel %vm389, %v305, 0
      %v1114 = vsel %vm389, %v306, 0
      %v1116 = vsel %vm389, %v307, 0
      %v1118 = vsel %vm389, %v308, 0
      %v1120 = vsel %vm389, %v309, 0
      %v1122 = vsel %vm389, %v310, 0
      %v1124 = vsel %vm389, %v311, 0
      %v1126 = vsel %vm389, %v312, 0
      %v1128 = vsel %vm389, %v313, 0
      %v1130 = vsel %vm389, %v314, 0
      %v1132 = vsel %vm389, %v315, 0
      %v1134 = vand.u32 %v1132, 4294901760
      %1135 = vmatpush.xpose.msra.mxu0 %v1134
      %v1136 = vand.u32 %v1130, 4294901760
      %1137 = vmatpush.xpose.msra.mxu0 %v1136
      %v1138 = vand.u32 %v1128, 4294901760
      %1139 = vmatpush.xpose.msra.mxu0 %v1138
      %v1140 = vand.u32 %v1126, 4294901760
      %1141 = vmatpush.xpose.msra.mxu0 %v1140
      %v1142 = vand.u32 %v1124, 4294901760
      %1143 = vmatpush.xpose.msra.mxu0 %v1142
      %v1144 = vand.u32 %v1122, 4294901760
      %1145 = vmatpush.xpose.msra.mxu0 %v1144
      %v1146 = vand.u32 %v1120, 4294901760
      %1147 = vmatpush.xpose.msra.mxu0 %v1146
      %v1148 = vand.u32 %v1118, 4294901760
      %1149 = vmatpush.xpose.msra.mxu0 %v1148
      %v1150 = vand.u32 %v1116, 4294901760
      %1151 = vmatpush.xpose.msra.mxu0 %v1150
      %v1152 = vand.u32 %v1114, 4294901760
      %1153 = vmatpush.xpose.msra.mxu0 %v1152
      %v1154 = vand.u32 %v1112, 4294901760
      %1155 = vmatpush.xpose.msra.mxu0 %v1154
      %v1156 = vand.u32 %v1110, 4294901760
      %1157 = vmatpush.xpose.msra.mxu0 %v1156
      %v1158 = vand.u32 %v1108, 4294901760
      %1159 = vmatpush.xpose.msra.mxu0 %v1158
      %v1160 = vand.u32 %v1106, 4294901760
      %1161 = vmatpush.xpose.msra.mxu0 %v1160
      %v1162 = vand.u32 %v1104, 4294901760
      %1163 = vmatpush.xpose.msra.mxu0 %v1162
      %v1164 = vand.u32 %v1102, 4294901760
      %1165 = vmatpush.xpose.msra.mxu0 %v1164
      %v1166 = vand.u32 %v1073, 4294901760
      %v1167 = vsub.f32 %v1073, %v1166
      %v1168 = vand.u32 %v1167, 4294901760
      %v1169 = vsub.f32 %v1167, %v1168
      %v1170 = vand.u32 %v1169, 4294901760
      %1171 = vmatmul.f32.gmra.mxu0 %v1170
      %v1172 = vpop.f32.mrf.mxu0
      %v1173 = vadd.f32 %v1034, %v1172
      %v1174 = vand.u32 %v1076, 4294901760
      %v1175 = vsub.f32 %v1076, %v1174
      %v1176 = vand.u32 %v1175, 4294901760
      %v1177 = vsub.f32 %v1175, %v1176
      %v1178 = vand.u32 %v1177, 4294901760
      %1179 = vmatmul.f32.gmra.mxu0 %v1178
      %v1180 = vpop.f32.mrf.mxu0
      %v1181 = vadd.f32 %v1038, %v1180
      %v1182 = vand.u32 %v1079, 4294901760
      %v1183 = vsub.f32 %v1079, %v1182
      %v1184 = vand.u32 %v1183, 4294901760
      %v1185 = vsub.f32 %v1183, %v1184
      %v1186 = vand.u32 %v1185, 4294901760
      %1187 = vmatmul.f32.gmra.mxu0 %v1186
      %v1188 = vpop.f32.mrf.mxu0
      %v1189 = vadd.f32 %v1042, %v1188
      %v1190 = vand.u32 %v1082, 4294901760
      %v1191 = vsub.f32 %v1082, %v1190
      %v1192 = vand.u32 %v1191, 4294901760
      %v1193 = vsub.f32 %v1191, %v1192
      %v1194 = vand.u32 %v1193, 4294901760
      %1195 = vmatmul.f32.gmra.mxu0 %v1194
      %v1196 = vpop.f32.mrf.mxu0
      %v1197 = vadd.f32 %v1046, %v1196
      %v1198 = vand.u32 %v1085, 4294901760
      %v1199 = vsub.f32 %v1085, %v1198
      %v1200 = vand.u32 %v1199, 4294901760
      %v1201 = vsub.f32 %v1199, %v1200
      %v1202 = vand.u32 %v1201, 4294901760
      %1203 = vmatmul.f32.gmra.mxu0 %v1202
      %v1204 = vpop.f32.mrf.mxu0
      %v1205 = vadd.f32 %v1050, %v1204
      %v1206 = vand.u32 %v1088, 4294901760
      %v1207 = vsub.f32 %v1088, %v1206
      %v1208 = vand.u32 %v1207, 4294901760
      %v1209 = vsub.f32 %v1207, %v1208
      %v1210 = vand.u32 %v1209, 4294901760
      %1211 = vmatmul.f32.gmra.mxu0 %v1210
      %v1212 = vpop.f32.mrf.mxu0
      %v1213 = vadd.f32 %v1054, %v1212
      %v1214 = vand.u32 %v1091, 4294901760
      %v1215 = vsub.f32 %v1091, %v1214
      %v1216 = vand.u32 %v1215, 4294901760
      %v1217 = vsub.f32 %v1215, %v1216
      %v1218 = vand.u32 %v1217, 4294901760
      %1219 = vmatmul.f32.gmra.mxu0 %v1218
      %v1220 = vpop.f32.mrf.mxu0
      %v1221 = vadd.f32 %v1058, %v1220
      %v1222 = vand.u32 %v1094, 4294901760
      %v1223 = vsub.f32 %v1094, %v1222
      %v1224 = vand.u32 %v1223, 4294901760
      %v1225 = vsub.f32 %v1223, %v1224
      %v1226 = vand.u32 %v1225, 4294901760
      %1227 = vmatmul.f32.gmra.mxu0 %v1226
      %v1228 = vpop.f32.mrf.mxu0
      %v1229 = vadd.f32 %v1062, %v1228
      %v1230 = vand.u32 %v1097, 4294901760
      %v1231 = vsub.f32 %v1097, %v1230
      %v1232 = vand.u32 %v1231, 4294901760
      %v1233 = vsub.f32 %v1231, %v1232
      %v1234 = vand.u32 %v1233, 4294901760
      %1235 = vmatmul.f32.gmra.mxu0 %v1234
      %v1236 = vpop.f32.mrf.mxu0
      %v1237 = vadd.f32 %v1066, %v1236
      %v1238 = vand.u32 %v1100, 4294901760
      %v1239 = vsub.f32 %v1100, %v1238
      %v1240 = vand.u32 %v1239, 4294901760
      %v1241 = vsub.f32 %v1239, %v1240
      %v1242 = vand.u32 %v1241, 4294901760
      %1243 = vmatmul.f32.gmra.mxu0 %v1242
      %v1244 = vpop.f32.mrf.mxu0
      %v1245 = vadd.f32 %v1070, %v1244
      %1246 = vdwg.mxu0
      %v1247 = vand.u32 %v1132, 4294901760
      %v1248 = vsub.f32 %v1132, %v1247
      %v1249 = vand.u32 %v1248, 4294901760
      %v1250 = vsub.f32 %v1248, %v1249
      %v1251 = vand.u32 %v1250, 4294901760
      %1252 = vmatpush.xpose.msra.mxu0 %v1251
      %v1253 = vand.u32 %v1130, 4294901760
      %v1254 = vsub.f32 %v1130, %v1253
      %v1255 = vand.u32 %v1254, 4294901760
      %v1256 = vsub.f32 %v1254, %v1255
      %v1257 = vand.u32 %v1256, 4294901760
      %1258 = vmatpush.xpose.msra.mxu0 %v1257
      %v1259 = vand.u32 %v1128, 4294901760
      %v1260 = vsub.f32 %v1128, %v1259
      %v1261 = vand.u32 %v1260, 4294901760
      %v1262 = vsub.f32 %v1260, %v1261
      %v1263 = vand.u32 %v1262, 4294901760
      %1264 = vmatpush.xpose.msra.mxu0 %v1263
      %v1265 = vand.u32 %v1126, 4294901760
      %v1266 = vsub.f32 %v1126, %v1265
      %v1267 = vand.u32 %v1266, 4294901760
      %v1268 = vsub.f32 %v1266, %v1267
      %v1269 = vand.u32 %v1268, 4294901760
      %1270 = vmatpush.xpose.msra.mxu0 %v1269
      %v1271 = vand.u32 %v1124, 4294901760
      %v1272 = vsub.f32 %v1124, %v1271
      %v1273 = vand.u32 %v1272, 4294901760
      %v1274 = vsub.f32 %v1272, %v1273
      %v1275 = vand.u32 %v1274, 4294901760
      %1276 = vmatpush.xpose.msra.mxu0 %v1275
      %v1277 = vand.u32 %v1122, 4294901760
      %v1278 = vsub.f32 %v1122, %v1277
      %v1279 = vand.u32 %v1278, 4294901760
      %v1280 = vsub.f32 %v1278, %v1279
      %v1281 = vand.u32 %v1280, 4294901760
      %1282 = vmatpush.xpose.msra.mxu0 %v1281
      %v1283 = vand.u32 %v1120, 4294901760
      %v1284 = vsub.f32 %v1120, %v1283
      %v1285 = vand.u32 %v1284, 4294901760
      %v1286 = vsub.f32 %v1284, %v1285
      %v1287 = vand.u32 %v1286, 4294901760
      %1288 = vmatpush.xpose.msra.mxu0 %v1287
      %v1289 = vand.u32 %v1118, 4294901760
      %v1290 = vsub.f32 %v1118, %v1289
      %v1291 = vand.u32 %v1290, 4294901760
      %v1292 = vsub.f32 %v1290, %v1291
      %v1293 = vand.u32 %v1292, 4294901760
      %1294 = vmatpush.xpose.msra.mxu0 %v1293
      %v1295 = vand.u32 %v1116, 4294901760
      %v1296 = vsub.f32 %v1116, %v1295
      %v1297 = vand.u32 %v1296, 4294901760
      %v1298 = vsub.f32 %v1296, %v1297
      %v1299 = vand.u32 %v1298, 4294901760
      %1300 = vmatpush.xpose.msra.mxu0 %v1299
      %v1301 = vand.u32 %v1114, 4294901760
      %v1302 = vsub.f32 %v1114, %v1301
      %v1303 = vand.u32 %v1302, 4294901760
      %v1304 = vsub.f32 %v1302, %v1303
      %v1305 = vand.u32 %v1304, 4294901760
      %1306 = vmatpush.xpose.msra.mxu0 %v1305
      %v1307 = vand.u32 %v1112, 4294901760
      %v1308 = vsub.f32 %v1112, %v1307
      %v1309 = vand.u32 %v1308, 4294901760
      %v1310 = vsub.f32 %v1308, %v1309
      %v1311 = vand.u32 %v1310, 4294901760
      %1312 = vmatpush.xpose.msra.mxu0 %v1311
      %v1313 = vand.u32 %v1110, 4294901760
      %v1314 = vsub.f32 %v1110, %v1313
      %v1315 = vand.u32 %v1314, 4294901760
      %v1316 = vsub.f32 %v1314, %v1315
      %v1317 = vand.u32 %v1316, 4294901760
      %1318 = vmatpush.xpose.msra.mxu0 %v1317
      %v1319 = vand.u32 %v1108, 4294901760
      %v1320 = vsub.f32 %v1108, %v1319
      %v1321 = vand.u32 %v1320, 4294901760
      %v1322 = vsub.f32 %v1320, %v1321
      %v1323 = vand.u32 %v1322, 4294901760
      %1324 = vmatpush.xpose.msra.mxu0 %v1323
      %v1325 = vand.u32 %v1106, 4294901760
      %v1326 = vsub.f32 %v1106, %v1325
      %v1327 = vand.u32 %v1326, 4294901760
      %v1328 = vsub.f32 %v1326, %v1327
      %v1329 = vand.u32 %v1328, 4294901760
      %1330 = vmatpush.xpose.msra.mxu0 %v1329
      %v1331 = vand.u32 %v1104, 4294901760
      %v1332 = vsub.f32 %v1104, %v1331
      %v1333 = vand.u32 %v1332, 4294901760
      %v1334 = vsub.f32 %v1332, %v1333
      %v1335 = vand.u32 %v1334, 4294901760
      %1336 = vmatpush.xpose.msra.mxu0 %v1335
      %v1337 = vand.u32 %v1102, 4294901760
      %v1338 = vsub.f32 %v1102, %v1337
      %v1339 = vand.u32 %v1338, 4294901760
      %v1340 = vsub.f32 %v1338, %v1339
      %v1341 = vand.u32 %v1340, 4294901760
      %1342 = vmatpush.xpose.msra.mxu0 %v1341
      %v1343 = vand.u32 %v1073, 4294901760
      %1344 = vmatmul.f32.gmra.mxu0 %v1343
      %v1345 = vpop.f32.mrf.mxu0
      %v1346 = vadd.f32 %v1173, %v1345
      %v1347 = vand.u32 %v1076, 4294901760
      %1348 = vmatmul.f32.gmra.mxu0 %v1347
      %v1349 = vpop.f32.mrf.mxu0
      %v1350 = vadd.f32 %v1181, %v1349
      %v1351 = vand.u32 %v1079, 4294901760
      %1352 = vmatmul.f32.gmra.mxu0 %v1351
      %v1353 = vpop.f32.mrf.mxu0
      %v1354 = vadd.f32 %v1189, %v1353
      %v1355 = vand.u32 %v1082, 4294901760
      %1356 = vmatmul.f32.gmra.mxu0 %v1355
      %v1357 = vpop.f32.mrf.mxu0
      %v1358 = vadd.f32 %v1197, %v1357
      %v1359 = vand.u32 %v1085, 4294901760
      %1360 = vmatmul.f32.gmra.mxu0 %v1359
      %v1361 = vpop.f32.mrf.mxu0
      %v1362 = vadd.f32 %v1205, %v1361
      %v1363 = vand.u32 %v1088, 4294901760
      %1364 = vmatmul.f32.gmra.mxu0 %v1363
      %v1365 = vpop.f32.mrf.mxu0
      %v1366 = vadd.f32 %v1213, %v1365
      %v1367 = vand.u32 %v1091, 4294901760
      %1368 = vmatmul.f32.gmra.mxu0 %v1367
      %v1369 = vpop.f32.mrf.mxu0
      %v1370 = vadd.f32 %v1221, %v1369
      %v1371 = vand.u32 %v1094, 4294901760
      %1372 = vmatmul.f32.gmra.mxu0 %v1371
      %v1373 = vpop.f32.mrf.mxu0
      %v1374 = vadd.f32 %v1229, %v1373
      %v1375 = vand.u32 %v1097, 4294901760
      %1376 = vmatmul.f32.gmra.mxu0 %v1375
      %v1377 = vpop.f32.mrf.mxu0
      %v1378 = vadd.f32 %v1237, %v1377
      %v1379 = vand.u32 %v1100, 4294901760
      %1380 = vmatmul.f32.gmra.mxu0 %v1379
      %v1381 = vpop.f32.mrf.mxu0
      %v1382 = vadd.f32 %v1245, %v1381
      %1383 = vdwg.mxu0
      %v1384 = vand.u32 %v1132, 4294901760
      %v1385 = vsub.f32 %v1132, %v1384
      %1386 = vmatpush.xpose.msra.mxu0 %v1385
      %v1387 = vand.u32 %v1130, 4294901760
      %v1388 = vsub.f32 %v1130, %v1387
      %1389 = vmatpush.xpose.msra.mxu0 %v1388
      %v1390 = vand.u32 %v1128, 4294901760
      %v1391 = vsub.f32 %v1128, %v1390
      %1392 = vmatpush.xpose.msra.mxu0 %v1391
      %v1393 = vand.u32 %v1126, 4294901760
      %v1394 = vsub.f32 %v1126, %v1393
      %1395 = vmatpush.xpose.msra.mxu0 %v1394
      %v1396 = vand.u32 %v1124, 4294901760
      %v1397 = vsub.f32 %v1124, %v1396
      %1398 = vmatpush.xpose.msra.mxu0 %v1397
      %v1399 = vand.u32 %v1122, 4294901760
      %v1400 = vsub.f32 %v1122, %v1399
      %1401 = vmatpush.xpose.msra.mxu0 %v1400
      %v1402 = vand.u32 %v1120, 4294901760
      %v1403 = vsub.f32 %v1120, %v1402
      %1404 = vmatpush.xpose.msra.mxu0 %v1403
      %v1405 = vand.u32 %v1118, 4294901760
      %v1406 = vsub.f32 %v1118, %v1405
      %1407 = vmatpush.xpose.msra.mxu0 %v1406
      %v1408 = vand.u32 %v1116, 4294901760
      %v1409 = vsub.f32 %v1116, %v1408
      %1410 = vmatpush.xpose.msra.mxu0 %v1409
      %v1411 = vand.u32 %v1114, 4294901760
      %v1412 = vsub.f32 %v1114, %v1411
      %1413 = vmatpush.xpose.msra.mxu0 %v1412
      %v1414 = vand.u32 %v1112, 4294901760
      %v1415 = vsub.f32 %v1112, %v1414
      %1416 = vmatpush.xpose.msra.mxu0 %v1415
      %v1417 = vand.u32 %v1110, 4294901760
      %v1418 = vsub.f32 %v1110, %v1417
      %1419 = vmatpush.xpose.msra.mxu0 %v1418
      %v1420 = vand.u32 %v1108, 4294901760
      %v1421 = vsub.f32 %v1108, %v1420
      %1422 = vmatpush.xpose.msra.mxu0 %v1421
      %v1423 = vand.u32 %v1106, 4294901760
      %v1424 = vsub.f32 %v1106, %v1423
      %1425 = vmatpush.xpose.msra.mxu0 %v1424
      %v1426 = vand.u32 %v1104, 4294901760
      %v1427 = vsub.f32 %v1104, %v1426
      %1428 = vmatpush.xpose.msra.mxu0 %v1427
      %v1429 = vand.u32 %v1102, 4294901760
      %v1430 = vsub.f32 %v1102, %v1429
      %1431 = vmatpush.xpose.msra.mxu0 %v1430
      %v1432 = vand.u32 %v1073, 4294901760
      %v1433 = vsub.f32 %v1073, %v1432
      %1434 = vmatmul.f32.gmra.mxu0 %v1433
      %v1435 = vpop.f32.mrf.mxu0
      %v1436 = vadd.f32 %v1346, %v1435
      %v1437 = vand.u32 %v1076, 4294901760
      %v1438 = vsub.f32 %v1076, %v1437
      %1439 = vmatmul.f32.gmra.mxu0 %v1438
      %v1440 = vpop.f32.mrf.mxu0
      %v1441 = vadd.f32 %v1350, %v1440
      %v1442 = vand.u32 %v1079, 4294901760
      %v1443 = vsub.f32 %v1079, %v1442
      %1444 = vmatmul.f32.gmra.mxu0 %v1443
      %v1445 = vpop.f32.mrf.mxu0
      %v1446 = vadd.f32 %v1354, %v1445
      %v1447 = vand.u32 %v1082, 4294901760
      %v1448 = vsub.f32 %v1082, %v1447
      %1449 = vmatmul.f32.gmra.mxu0 %v1448
      %v1450 = vpop.f32.mrf.mxu0
      %v1451 = vadd.f32 %v1358, %v1450
      %v1452 = vand.u32 %v1085, 4294901760
      %v1453 = vsub.f32 %v1085, %v1452
      %1454 = vmatmul.f32.gmra.mxu0 %v1453
      %v1455 = vpop.f32.mrf.mxu0
      %v1456 = vadd.f32 %v1362, %v1455
      %v1457 = vand.u32 %v1088, 4294901760
      %v1458 = vsub.f32 %v1088, %v1457
      %1459 = vmatmul.f32.gmra.mxu0 %v1458
      %v1460 = vpop.f32.mrf.mxu0
      %v1461 = vadd.f32 %v1366, %v1460
      %v1462 = vand.u32 %v1091, 4294901760
      %v1463 = vsub.f32 %v1091, %v1462
      %1464 = vmatmul.f32.gmra.mxu0 %v1463
      %v1465 = vpop.f32.mrf.mxu0
      %v1466 = vadd.f32 %v1370, %v1465
      %v1467 = vand.u32 %v1094, 4294901760
      %v1468 = vsub.f32 %v1094, %v1467
      %1469 = vmatmul.f32.gmra.mxu0 %v1468
      %v1470 = vpop.f32.mrf.mxu0
      %v1471 = vadd.f32 %v1374, %v1470
      %v1472 = vand.u32 %v1097, 4294901760
      %v1473 = vsub.f32 %v1097, %v1472
      %1474 = vmatmul.f32.gmra.mxu0 %v1473
      %v1475 = vpop.f32.mrf.mxu0
      %v1476 = vadd.f32 %v1378, %v1475
      %v1477 = vand.u32 %v1100, 4294901760
      %v1478 = vsub.f32 %v1100, %v1477
      %1479 = vmatmul.f32.gmra.mxu0 %v1478
      %v1480 = vpop.f32.mrf.mxu0
      %v1481 = vadd.f32 %v1382, %v1480
      %1482 = vdwg.mxu0
      %v1483 = vand.u32 %v1132, 4294901760
      %1484 = vmatpush.xpose.msra.mxu0 %v1483
      %v1485 = vand.u32 %v1130, 4294901760
      %1486 = vmatpush.xpose.msra.mxu0 %v1485
      %v1487 = vand.u32 %v1128, 4294901760
      %1488 = vmatpush.xpose.msra.mxu0 %v1487
      %v1489 = vand.u32 %v1126, 4294901760
      %1490 = vmatpush.xpose.msra.mxu0 %v1489
      %v1491 = vand.u32 %v1124, 4294901760
      %1492 = vmatpush.xpose.msra.mxu0 %v1491
      %v1493 = vand.u32 %v1122, 4294901760
      %1494 = vmatpush.xpose.msra.mxu0 %v1493
      %v1495 = vand.u32 %v1120, 4294901760
      %1496 = vmatpush.xpose.msra.mxu0 %v1495
      %v1497 = vand.u32 %v1118, 4294901760
      %1498 = vmatpush.xpose.msra.mxu0 %v1497
      %v1499 = vand.u32 %v1116, 4294901760
      %1500 = vmatpush.xpose.msra.mxu0 %v1499
      %v1501 = vand.u32 %v1114, 4294901760
      %1502 = vmatpush.xpose.msra.mxu0 %v1501
      %v1503 = vand.u32 %v1112, 4294901760
      %1504 = vmatpush.xpose.msra.mxu0 %v1503
      %v1505 = vand.u32 %v1110, 4294901760
      %1506 = vmatpush.xpose.msra.mxu0 %v1505
      %v1507 = vand.u32 %v1108, 4294901760
      %1508 = vmatpush.xpose.msra.mxu0 %v1507
      %v1509 = vand.u32 %v1106, 4294901760
      %1510 = vmatpush.xpose.msra.mxu0 %v1509
      %v1511 = vand.u32 %v1104, 4294901760
      %1512 = vmatpush.xpose.msra.mxu0 %v1511
      %v1513 = vand.u32 %v1102, 4294901760
      %1514 = vmatpush.xpose.msra.mxu0 %v1513
      %v1515 = vand.u32 %v1073, 4294901760
      %v1516 = vsub.f32 %v1073, %v1515
      %v1517 = vand.u32 %v1516, 4294901760
      %1518 = vmatmul.f32.gmra.mxu0 %v1517
      %v1519 = vpop.f32.mrf.mxu0
      %v1520 = vadd.f32 %v1436, %v1519
      %v1521 = vand.u32 %v1076, 4294901760
      %v1522 = vsub.f32 %v1076, %v1521
      %v1523 = vand.u32 %v1522, 4294901760
      %1524 = vmatmul.f32.gmra.mxu0 %v1523
      %v1525 = vpop.f32.mrf.mxu0
      %v1526 = vadd.f32 %v1441, %v1525
      %v1527 = vand.u32 %v1079, 4294901760
      %v1528 = vsub.f32 %v1079, %v1527
      %v1529 = vand.u32 %v1528, 4294901760
      %1530 = vmatmul.f32.gmra.mxu0 %v1529
      %v1531 = vpop.f32.mrf.mxu0
      %v1532 = vadd.f32 %v1446, %v1531
      %v1533 = vand.u32 %v1082, 4294901760
      %v1534 = vsub.f32 %v1082, %v1533
      %v1535 = vand.u32 %v1534, 4294901760
      %1536 = vmatmul.f32.gmra.mxu0 %v1535
      %v1537 = vpop.f32.mrf.mxu0
      %v1538 = vadd.f32 %v1451, %v1537
      %v1539 = vand.u32 %v1085, 4294901760
      %v1540 = vsub.f32 %v1085, %v1539
      %v1541 = vand.u32 %v1540, 4294901760
      %1542 = vmatmul.f32.gmra.mxu0 %v1541
      %v1543 = vpop.f32.mrf.mxu0
      %v1544 = vadd.f32 %v1456, %v1543
      %v1545 = vand.u32 %v1088, 4294901760
      %v1546 = vsub.f32 %v1088, %v1545
      %v1547 = vand.u32 %v1546, 4294901760
      %1548 = vmatmul.f32.gmra.mxu0 %v1547
      %v1549 = vpop.f32.mrf.mxu0
      %v1550 = vadd.f32 %v1461, %v1549
      %v1551 = vand.u32 %v1091, 4294901760
      %v1552 = vsub.f32 %v1091, %v1551
      %v1553 = vand.u32 %v1552, 4294901760
      %1554 = vmatmul.f32.gmra.mxu0 %v1553
      %v1555 = vpop.f32.mrf.mxu0
      %v1556 = vadd.f32 %v1466, %v1555
      %v1557 = vand.u32 %v1094, 4294901760
      %v1558 = vsub.f32 %v1094, %v1557
      %v1559 = vand.u32 %v1558, 4294901760
      %1560 = vmatmul.f32.gmra.mxu0 %v1559
      %v1561 = vpop.f32.mrf.mxu0
      %v1562 = vadd.f32 %v1471, %v1561
      %v1563 = vand.u32 %v1097, 4294901760
      %v1564 = vsub.f32 %v1097, %v1563
      %v1565 = vand.u32 %v1564, 4294901760
      %1566 = vmatmul.f32.gmra.mxu0 %v1565
      %v1567 = vpop.f32.mrf.mxu0
      %v1568 = vadd.f32 %v1476, %v1567
      %v1569 = vand.u32 %v1100, 4294901760
      %v1570 = vsub.f32 %v1100, %v1569
      %v1571 = vand.u32 %v1570, 4294901760
      %1572 = vmatmul.f32.gmra.mxu0 %v1571
      %v1573 = vpop.f32.mrf.mxu0
      %v1574 = vadd.f32 %v1481, %v1573
      %1575 = vdwg.mxu0
      %v1576 = vand.u32 %v1132, 4294901760
      %v1577 = vsub.f32 %v1132, %v1576
      %v1578 = vand.u32 %v1577, 4294901760
      %1579 = vmatpush.xpose.msra.mxu0 %v1578
      %v1580 = vand.u32 %v1130, 4294901760
      %v1581 = vsub.f32 %v1130, %v1580
      %v1582 = vand.u32 %v1581, 4294901760
      %1583 = vmatpush.xpose.msra.mxu0 %v1582
      %v1584 = vand.u32 %v1128, 4294901760
      %v1585 = vsub.f32 %v1128, %v1584
      %v1586 = vand.u32 %v1585, 4294901760
      %1587 = vmatpush.xpose.msra.mxu0 %v1586
      %v1588 = vand.u32 %v1126, 4294901760
      %v1589 = vsub.f32 %v1126, %v1588
      %v1590 = vand.u32 %v1589, 4294901760
      %1591 = vmatpush.xpose.msra.mxu0 %v1590
      %v1592 = vand.u32 %v1124, 4294901760
      %v1593 = vsub.f32 %v1124, %v1592
      %v1594 = vand.u32 %v1593, 4294901760
      %1595 = vmatpush.xpose.msra.mxu0 %v1594
      %v1596 = vand.u32 %v1122, 4294901760
      %v1597 = vsub.f32 %v1122, %v1596
      %v1598 = vand.u32 %v1597, 4294901760
      %1599 = vmatpush.xpose.msra.mxu0 %v1598
      %v1600 = vand.u32 %v1120, 4294901760
      %v1601 = vsub.f32 %v1120, %v1600
      %v1602 = vand.u32 %v1601, 4294901760
      %1603 = vmatpush.xpose.msra.mxu0 %v1602
      %v1604 = vand.u32 %v1118, 4294901760
      %v1605 = vsub.f32 %v1118, %v1604
      %v1606 = vand.u32 %v1605, 4294901760
      %1607 = vmatpush.xpose.msra.mxu0 %v1606
      %v1608 = vand.u32 %v1116, 4294901760
      %v1609 = vsub.f32 %v1116, %v1608
      %v1610 = vand.u32 %v1609, 4294901760
      %1611 = vmatpush.xpose.msra.mxu0 %v1610
      %v1612 = vand.u32 %v1114, 4294901760
      %v1613 = vsub.f32 %v1114, %v1612
      %v1614 = vand.u32 %v1613, 4294901760
      %1615 = vmatpush.xpose.msra.mxu0 %v1614
      %v1616 = vand.u32 %v1112, 4294901760
      %v1617 = vsub.f32 %v1112, %v1616
      %v1618 = vand.u32 %v1617, 4294901760
      %1619 = vmatpush.xpose.msra.mxu0 %v1618
      %v1620 = vand.u32 %v1110, 4294901760
      %v1621 = vsub.f32 %v1110, %v1620
      %v1622 = vand.u32 %v1621, 4294901760
      %1623 = vmatpush.xpose.msra.mxu0 %v1622
      %v1624 = vand.u32 %v1108, 4294901760
      %v1625 = vsub.f32 %v1108, %v1624
      %v1626 = vand.u32 %v1625, 4294901760
      %1627 = vmatpush.xpose.msra.mxu0 %v1626
      %v1628 = vand.u32 %v1106, 4294901760
      %v1629 = vsub.f32 %v1106, %v1628
      %v1630 = vand.u32 %v1629, 4294901760
      %1631 = vmatpush.xpose.msra.mxu0 %v1630
      %v1632 = vand.u32 %v1104, 4294901760
      %v1633 = vsub.f32 %v1104, %v1632
      %v1634 = vand.u32 %v1633, 4294901760
      %1635 = vmatpush.xpose.msra.mxu0 %v1634
      %v1636 = vand.u32 %v1102, 4294901760
      %v1637 = vsub.f32 %v1102, %v1636
      %v1638 = vand.u32 %v1637, 4294901760
      %1639 = vmatpush.xpose.msra.mxu0 %v1638
      %v1640 = vand.u32 %v1073, 4294901760
      %1641 = vmatmul.f32.gmra.mxu0 %v1640
      %v1642 = vpop.f32.mrf.mxu0
      %v1643 = vadd.f32 %v1520, %v1642
      %v1644 = vand.u32 %v1076, 4294901760
      %1645 = vmatmul.f32.gmra.mxu0 %v1644
      %v1646 = vpop.f32.mrf.mxu0
      %v1647 = vadd.f32 %v1526, %v1646
      %v1648 = vand.u32 %v1079, 4294901760
      %1649 = vmatmul.f32.gmra.mxu0 %v1648
      %v1650 = vpop.f32.mrf.mxu0
      %v1651 = vadd.f32 %v1532, %v1650
      %v1652 = vand.u32 %v1082, 4294901760
      %1653 = vmatmul.f32.gmra.mxu0 %v1652
      %v1654 = vpop.f32.mrf.mxu0
      %v1655 = vadd.f32 %v1538, %v1654
      %v1656 = vand.u32 %v1085, 4294901760
      %1657 = vmatmul.f32.gmra.mxu0 %v1656
      %v1658 = vpop.f32.mrf.mxu0
      %v1659 = vadd.f32 %v1544, %v1658
      %v1660 = vand.u32 %v1088, 4294901760
      %1661 = vmatmul.f32.gmra.mxu0 %v1660
      %v1662 = vpop.f32.mrf.mxu0
      %v1663 = vadd.f32 %v1550, %v1662
      %v1664 = vand.u32 %v1091, 4294901760
      %1665 = vmatmul.f32.gmra.mxu0 %v1664
      %v1666 = vpop.f32.mrf.mxu0
      %v1667 = vadd.f32 %v1556, %v1666
      %v1668 = vand.u32 %v1094, 4294901760
      %1669 = vmatmul.f32.gmra.mxu0 %v1668
      %v1670 = vpop.f32.mrf.mxu0
      %v1671 = vadd.f32 %v1562, %v1670
      %v1672 = vand.u32 %v1097, 4294901760
      %1673 = vmatmul.f32.gmra.mxu0 %v1672
      %v1674 = vpop.f32.mrf.mxu0
      %v1675 = vadd.f32 %v1568, %v1674
      %v1676 = vand.u32 %v1100, 4294901760
      %1677 = vmatmul.f32.gmra.mxu0 %v1676
      %v1678 = vpop.f32.mrf.mxu0
      %v1679 = vadd.f32 %v1574, %v1678
      %1680 = vdwg.mxu0
      %v1681 = vand.u32 %v1132, 4294901760
      %1682 = vmatpush.xpose.msra.mxu0 %v1681
      %v1683 = vand.u32 %v1130, 4294901760
      %1684 = vmatpush.xpose.msra.mxu0 %v1683
      %v1685 = vand.u32 %v1128, 4294901760
      %1686 = vmatpush.xpose.msra.mxu0 %v1685
      %v1687 = vand.u32 %v1126, 4294901760
      %1688 = vmatpush.xpose.msra.mxu0 %v1687
      %v1689 = vand.u32 %v1124, 4294901760
      %1690 = vmatpush.xpose.msra.mxu0 %v1689
      %v1691 = vand.u32 %v1122, 4294901760
      %1692 = vmatpush.xpose.msra.mxu0 %v1691
      %v1693 = vand.u32 %v1120, 4294901760
      %1694 = vmatpush.xpose.msra.mxu0 %v1693
      %v1695 = vand.u32 %v1118, 4294901760
      %1696 = vmatpush.xpose.msra.mxu0 %v1695
      %v1697 = vand.u32 %v1116, 4294901760
      %1698 = vmatpush.xpose.msra.mxu0 %v1697
      %v1699 = vand.u32 %v1114, 4294901760
      %1700 = vmatpush.xpose.msra.mxu0 %v1699
      %v1701 = vand.u32 %v1112, 4294901760
      %1702 = vmatpush.xpose.msra.mxu0 %v1701
      %v1703 = vand.u32 %v1110, 4294901760
      %1704 = vmatpush.xpose.msra.mxu0 %v1703
      %v1705 = vand.u32 %v1108, 4294901760
      %1706 = vmatpush.xpose.msra.mxu0 %v1705
      %v1707 = vand.u32 %v1106, 4294901760
      %1708 = vmatpush.xpose.msra.mxu0 %v1707
      %v1709 = vand.u32 %v1104, 4294901760
      %1710 = vmatpush.xpose.msra.mxu0 %v1709
      %v1711 = vand.u32 %v1102, 4294901760
      %1712 = vmatpush.xpose.msra.mxu0 %v1711
      %v1713 = vand.u32 %v1073, 4294901760
      %1714 = vmatmul.f32.gmra.mxu0 %v1713
      %v1715 = vpop.f32.mrf.mxu0
      %v1716 = vadd.f32 %v1643, %v1715
      %v1717 = vand.u32 %v1076, 4294901760
      %1718 = vmatmul.f32.gmra.mxu0 %v1717
      %v1719 = vpop.f32.mrf.mxu0
      %v1720 = vadd.f32 %v1647, %v1719
      %v1721 = vand.u32 %v1079, 4294901760
      %1722 = vmatmul.f32.gmra.mxu0 %v1721
      %v1723 = vpop.f32.mrf.mxu0
      %v1724 = vadd.f32 %v1651, %v1723
      %v1725 = vand.u32 %v1082, 4294901760
      %1726 = vmatmul.f32.gmra.mxu0 %v1725
      %v1727 = vpop.f32.mrf.mxu0
      %v1728 = vadd.f32 %v1655, %v1727
      %v1729 = vand.u32 %v1085, 4294901760
      %1730 = vmatmul.f32.gmra.mxu0 %v1729
      %v1731 = vpop.f32.mrf.mxu0
      %v1732 = vadd.f32 %v1659, %v1731
      %v1733 = vand.u32 %v1088, 4294901760
      %1734 = vmatmul.f32.gmra.mxu0 %v1733
      %v1735 = vpop.f32.mrf.mxu0
      %v1736 = vadd.f32 %v1663, %v1735
      %v1737 = vand.u32 %v1091, 4294901760
      %1738 = vmatmul.f32.gmra.mxu0 %v1737
      %v1739 = vpop.f32.mrf.mxu0
      %v1740 = vadd.f32 %v1667, %v1739
      %v1741 = vand.u32 %v1094, 4294901760
      %1742 = vmatmul.f32.gmra.mxu0 %v1741
      %v1743 = vpop.f32.mrf.mxu0
      %v1744 = vadd.f32 %v1671, %v1743
      %v1745 = vand.u32 %v1097, 4294901760
      %1746 = vmatmul.f32.gmra.mxu0 %v1745
      %v1747 = vpop.f32.mrf.mxu0
      %v1748 = vadd.f32 %v1675, %v1747
      %v1749 = vand.u32 %v1100, 4294901760
      %1750 = vmatmul.f32.gmra.mxu0 %v1749
      %v1751 = vpop.f32.mrf.mxu0
      %v1752 = vadd.f32 %v1679, %v1751
      %1753 = vdwg.mxu0
      %v1754 = vmul.f32 %v1716, %v1716
      %v1755 = vmul.f32 %v1720, %v1720
      %v1756 = vmul.f32 %v1724, %v1724
      %v1757 = vmul.f32 %v1728, %v1728
      %v1758 = vmul.f32 %v1732, %v1732
      %v1759 = vmul.f32 %v1736, %v1736
      %v1760 = vmul.f32 %v1740, %v1740
      %v1761 = vmul.f32 %v1744, %v1744
      %v1762 = vmul.f32 %v1748, %v1748
      %v1763 = vmul.f32 %v1752, %v1752
      %v1764 = vadd.f32 %v1754, %v1759
      %v1765 = vadd.f32 %v1755, %v1760
      %v1766 = vadd.f32 %v1756, %v1761
      %v1767 = vadd.f32 %v1757, %v1762
      %v1768 = vadd.f32 %v1758, %v1763
      %v1769 = vmax.f32 %v1764, 1.1920929e-07
      %v1770 = vmax.f32 %v1765, 1.1920929e-07
      %v1771 = vmax.f32 %v1766, 1.1920929e-07
      %v1772 = vmax.f32 %v1767, 1.1920929e-07
      %v1773 = vmax.f32 %v1768, 1.1920929e-07
      %v1774 = vrsqrt.pop %v1769
      %v1775 = vmul.f32 %v1774, %v1769
      %v1776 = vmul.f32 %v1775, %v1774
      %v1777 = vmul.f32 0.5, %v1776
      %v1778 = vsub.f32 1.5, %v1777
      %v1779 = vmul.f32 %v1774, %v1778
      %v1780 = vmul.f32 %v1769, %v1779
      %vm1781 = vcmp.eq.f32.partialorder %v1769, inf
      %v1782 = vsel %vm1781, %v1769, %v1780
      %vm1783 = vcmp.eq.f32.partialorder %v1769, 0.0
      %v1784 = vand.u32 %v1769, 2147483648
      %v1785 = vsel %vm1783, %v1784, %v1782
      %v1786 = vrsqrt.pop %v1770
      %v1787 = vmul.f32 %v1786, %v1770
      %v1788 = vmul.f32 %v1787, %v1786
      %v1789 = vmul.f32 0.5, %v1788
      %v1790 = vsub.f32 1.5, %v1789
      %v1791 = vmul.f32 %v1786, %v1790
      %v1792 = vmul.f32 %v1770, %v1791
      %vm1793 = vcmp.eq.f32.partialorder %v1770, inf
      %v1794 = vsel %vm1793, %v1770, %v1792
      %vm1795 = vcmp.eq.f32.partialorder %v1770, 0.0
      %v1796 = vand.u32 %v1770, 2147483648
      %v1797 = vsel %vm1795, %v1796, %v1794
      %v1798 = vrsqrt.pop %v1771
      %v1799 = vmul.f32 %v1798, %v1771
      %v1800 = vmul.f32 %v1799, %v1798
      %v1801 = vmul.f32 0.5, %v1800
      %v1802 = vsub.f32 1.5, %v1801
      %v1803 = vmul.f32 %v1798, %v1802
      %v1804 = vmul.f32 %v1771, %v1803
      %vm1805 = vcmp.eq.f32.partialorder %v1771, inf
      %v1806 = vsel %vm1805, %v1771, %v1804
      %vm1807 = vcmp.eq.f32.partialorder %v1771, 0.0
      %v1808 = vand.u32 %v1771, 2147483648
      %v1809 = vsel %vm1807, %v1808, %v1806
      %v1810 = vrsqrt.pop %v1772
      %v1811 = vmul.f32 %v1810, %v1772
      %v1812 = vmul.f32 %v1811, %v1810
      %v1813 = vmul.f32 0.5, %v1812
      %v1814 = vsub.f32 1.5, %v1813
      %v1815 = vmul.f32 %v1810, %v1814
      %v1816 = vmul.f32 %v1772, %v1815
      %vm1817 = vcmp.eq.f32.partialorder %v1772, inf
      %v1818 = vsel %vm1817, %v1772, %v1816
      %vm1819 = vcmp.eq.f32.partialorder %v1772, 0.0
      %v1820 = vand.u32 %v1772, 2147483648
      %v1821 = vsel %vm1819, %v1820, %v1818
      %v1822 = vrsqrt.pop %v1773
      %v1823 = vmul.f32 %v1822, %v1773
      %v1824 = vmul.f32 %v1823, %v1822
      %v1825 = vmul.f32 0.5, %v1824
      %v1826 = vsub.f32 1.5, %v1825
      %v1827 = vmul.f32 %v1822, %v1826
      %v1828 = vmul.f32 %v1773, %v1827
      %vm1829 = vcmp.eq.f32.partialorder %v1773, inf
      %v1830 = vsel %vm1829, %v1773, %v1828
      %vm1831 = vcmp.eq.f32.partialorder %v1773, 0.0
      %v1832 = vand.u32 %v1773, 2147483648
      %v1833 = vsel %vm1831, %v1832, %v1830
      %v1834 = vadd.f32 %v1736, 1.1920929e-07
      %v1835 = vadd.f32 %v1740, 1.1920929e-07
      %v1836 = vadd.f32 %v1744, 1.1920929e-07
      %v1837 = vadd.f32 %v1748, 1.1920929e-07
      %v1838 = vadd.f32 %v1752, 1.1920929e-07
      %v1839 = vadd.f32 %v1716, 1.1920929e-07
      %v1840 = vadd.f32 %v1720, 1.1920929e-07
      %v1841 = vadd.f32 %v1724, 1.1920929e-07
      %v1842 = vadd.f32 %v1728, 1.1920929e-07
      %v1843 = vadd.f32 %v1732, 1.1920929e-07
      %v1844 = vand.u32 2147483647, %v1834
      %v1845 = vand.u32 2147483647, %v1835
      %v1846 = vand.u32 2147483647, %v1836
      %v1847 = vand.u32 2147483647, %v1837
      %v1848 = vand.u32 2147483647, %v1838
      %v1849 = vand.u32 2147483647, %v1839
      %v1850 = vand.u32 2147483647, %v1840
      %v1851 = vand.u32 2147483647, %v1841
      %v1852 = vand.u32 2147483647, %v1842
      %v1853 = vand.u32 2147483647, %v1843
      %v1854 = vmax.f32 %v1849, %v1844
      %v1855 = vmax.f32 %v1850, %v1845
      %v1856 = vmax.f32 %v1851, %v1846
      %v1857 = vmax.f32 %v1852, %v1847
      %v1858 = vmax.f32 %v1853, %v1848
      %v1859 = vmin.f32 %v1849, %v1844
      %v1860 = vmin.f32 %v1850, %v1845
      %v1861 = vmin.f32 %v1851, %v1846
      %v1862 = vmin.f32 %v1852, %v1847
      %v1863 = vmin.f32 %v1853, %v1848
      %v1864 = vmax.f32 %v1854, 1e-30
      %v1865 = vmax.f32 %v1855, 1e-30
      %v1866 = vmax.f32 %v1856, 1e-30
      %v1867 = vmax.f32 %v1857, 1e-30
      %v1868 = vmax.f32 %v1858, 1e-30
      %v1869 = vrcp.pop %v1864
      %v1870 = vmul.f32 %v1864, %v1869
      %v1871 = vsub.f32 1.0, %v1870
      %v1872 = vmul.f32 %v1869, %v1871
      %v1873 = vadd.f32 %v1869, %v1872
      %vm1874 = vweird.f32 %v1864
      %vm1875 = vweird.f32 %v1869
      %vm1876 = vmor %vm1874, %vm1875
      %v1877 = vsel %vm1876, %v1869, %v1873
      %v1878 = vand.u32 2147483647, %v1864
      %vm1879 = vcmp.eq.f32.partialorder %v1878, 8.507059e+37
      %v1880 = vand.u32 %v1864, 2147483648
      %v1881 = vor.u32 1.1754944e-38, %v1880
      %v1882 = vsel %vm1879, %v1881, %v1877
      %v1883 = vmul.f32 %v1859, %v1882
      %v1884 = vrcp.pop %v1865
      %v1885 = vmul.f32 %v1865, %v1884
      %v1886 = vsub.f32 1.0, %v1885
      %v1887 = vmul.f32 %v1884, %v1886
      %v1888 = vadd.f32 %v1884, %v1887
      %vm1889 = vweird.f32 %v1865
      %vm1890 = vweird.f32 %v1884
      %vm1891 = vmor %vm1889, %vm1890
      %v1892 = vsel %vm1891, %v1884, %v1888
      %v1893 = vand.u32 2147483647, %v1865
      %vm1894 = vcmp.eq.f32.partialorder %v1893, 8.507059e+37
      %v1895 = vand.u32 %v1865, 2147483648
      %v1896 = vor.u32 1.1754944e-38, %v1895
      %v1897 = vsel %vm1894, %v1896, %v1892
      %v1898 = vmul.f32 %v1860, %v1897
      %v1899 = vrcp.pop %v1866
      %v1900 = vmul.f32 %v1866, %v1899
      %v1901 = vsub.f32 1.0, %v1900
      %v1902 = vmul.f32 %v1899, %v1901
      %v1903 = vadd.f32 %v1899, %v1902
      %vm1904 = vweird.f32 %v1866
      %vm1905 = vweird.f32 %v1899
      %vm1906 = vmor %vm1904, %vm1905
      %v1907 = vsel %vm1906, %v1899, %v1903
      %v1908 = vand.u32 2147483647, %v1866
      %vm1909 = vcmp.eq.f32.partialorder %v1908, 8.507059e+37
      %v1910 = vand.u32 %v1866, 2147483648
      %v1911 = vor.u32 1.1754944e-38, %v1910
      %v1912 = vsel %vm1909, %v1911, %v1907
      %v1913 = vmul.f32 %v1861, %v1912
      %v1914 = vrcp.pop %v1867
      %v1915 = vmul.f32 %v1867, %v1914
      %v1916 = vsub.f32 1.0, %v1915
      %v1917 = vmul.f32 %v1914, %v1916
      %v1918 = vadd.f32 %v1914, %v1917
      %vm1919 = vweird.f32 %v1867
      %vm1920 = vweird.f32 %v1914
      %vm1921 = vmor %vm1919, %vm1920
      %v1922 = vsel %vm1921, %v1914, %v1918
      %v1923 = vand.u32 2147483647, %v1867
      %vm1924 = vcmp.eq.f32.partialorder %v1923, 8.507059e+37
      %v1925 = vand.u32 %v1867, 2147483648
      %v1926 = vor.u32 1.1754944e-38, %v1925
      %v1927 = vsel %vm1924, %v1926, %v1922
      %v1928 = vmul.f32 %v1862, %v1927
      %v1929 = vrcp.pop %v1868
      %v1930 = vmul.f32 %v1868, %v1929
      %v1931 = vsub.f32 1.0, %v1930
      %v1932 = vmul.f32 %v1929, %v1931
      %v1933 = vadd.f32 %v1929, %v1932
      %vm1934 = vweird.f32 %v1868
      %vm1935 = vweird.f32 %v1929
      %vm1936 = vmor %vm1934, %vm1935
      %v1937 = vsel %vm1936, %v1929, %v1933
      %v1938 = vand.u32 2147483647, %v1868
      %vm1939 = vcmp.eq.f32.partialorder %v1938, 8.507059e+37
      %v1940 = vand.u32 %v1868, 2147483648
      %v1941 = vor.u32 1.1754944e-38, %v1940
      %v1942 = vsel %vm1939, %v1941, %v1937
      %v1943 = vmul.f32 %v1863, %v1942
      %vm1944 = vcmp.gt.f32.partialorder %v1883, 0.41421357
      %vm1945 = vcmp.gt.f32.partialorder %v1898, 0.41421357
      %vm1946 = vcmp.gt.f32.partialorder %v1913, 0.41421357
      %vm1947 = vcmp.gt.f32.partialorder %v1928, 0.41421357
      %vm1948 = vcmp.gt.f32.partialorder %v1943, 0.41421357
      %v1949 = vsub.f32 %v1883, 1.0
      %v1950 = vsub.f32 %v1898, 1.0
      %v1951 = vsub.f32 %v1913, 1.0
      %v1952 = vsub.f32 %v1928, 1.0
      %v1953 = vsub.f32 %v1943, 1.0
      %v1954 = vadd.f32 %v1883, 1.0
      %v1955 = vadd.f32 %v1898, 1.0
      %v1956 = vadd.f32 %v1913, 1.0
      %v1957 = vadd.f32 %v1928, 1.0
      %v1958 = vadd.f32 %v1943, 1.0
      %v1959 = vrcp.pop %v1954
      %v1960 = vmul.f32 %v1954, %v1959
      %v1961 = vsub.f32 1.0, %v1960
      %v1962 = vmul.f32 %v1959, %v1961
      %v1963 = vadd.f32 %v1959, %v1962
      %vm1964 = vweird.f32 %v1954
      %vm1965 = vweird.f32 %v1959
      %vm1966 = vmor %vm1964, %vm1965
      %v1967 = vsel %vm1966, %v1959, %v1963
      %v1968 = vand.u32 2147483647, %v1954
      %vm1969 = vcmp.eq.f32.partialorder %v1968, 8.507059e+37
      %v1970 = vand.u32 %v1954, 2147483648
      %v1971 = vor.u32 1.1754944e-38, %v1970
      %v1972 = vsel %vm1969, %v1971, %v1967
      %v1973 = vmul.f32 %v1949, %v1972
      %v1974 = vrcp.pop %v1955
      %v1975 = vmul.f32 %v1955, %v1974
      %v1976 = vsub.f32 1.0, %v1975
      %v1977 = vmul.f32 %v1974, %v1976
      %v1978 = vadd.f32 %v1974, %v1977
      %vm1979 = vweird.f32 %v1955
      %vm1980 = vweird.f32 %v1974
      %vm1981 = vmor %vm1979, %vm1980
      %v1982 = vsel %vm1981, %v1974, %v1978
      %v1983 = vand.u32 2147483647, %v1955
      %vm1984 = vcmp.eq.f32.partialorder %v1983, 8.507059e+37
      %v1985 = vand.u32 %v1955, 2147483648
      %v1986 = vor.u32 1.1754944e-38, %v1985
      %v1987 = vsel %vm1984, %v1986, %v1982
      %v1988 = vmul.f32 %v1950, %v1987
      %v1989 = vrcp.pop %v1956
      %v1990 = vmul.f32 %v1956, %v1989
      %v1991 = vsub.f32 1.0, %v1990
      %v1992 = vmul.f32 %v1989, %v1991
      %v1993 = vadd.f32 %v1989, %v1992
      %vm1994 = vweird.f32 %v1956
      %vm1995 = vweird.f32 %v1989
      %vm1996 = vmor %vm1994, %vm1995
      %v1997 = vsel %vm1996, %v1989, %v1993
      %v1998 = vand.u32 2147483647, %v1956
      %vm1999 = vcmp.eq.f32.partialorder %v1998, 8.507059e+37
      %v2000 = vand.u32 %v1956, 2147483648
      %v2001 = vor.u32 1.1754944e-38, %v2000
      %v2002 = vsel %vm1999, %v2001, %v1997
      %v2003 = vmul.f32 %v1951, %v2002
      %v2004 = vrcp.pop %v1957
      %v2005 = vmul.f32 %v1957, %v2004
      %v2006 = vsub.f32 1.0, %v2005
      %v2007 = vmul.f32 %v2004, %v2006
      %v2008 = vadd.f32 %v2004, %v2007
      %vm2009 = vweird.f32 %v1957
      %vm2010 = vweird.f32 %v2004
      %vm2011 = vmor %vm2009, %vm2010
      %v2012 = vsel %vm2011, %v2004, %v2008
      %v2013 = vand.u32 2147483647, %v1957
      %vm2014 = vcmp.eq.f32.partialorder %v2013, 8.507059e+37
      %v2015 = vand.u32 %v1957, 2147483648
      %v2016 = vor.u32 1.1754944e-38, %v2015
      %v2017 = vsel %vm2014, %v2016, %v2012
      %v2018 = vmul.f32 %v1952, %v2017
      %v2019 = vrcp.pop %v1958
      %v2020 = vmul.f32 %v1958, %v2019
      %v2021 = vsub.f32 1.0, %v2020
      %v2022 = vmul.f32 %v2019, %v2021
      %v2023 = vadd.f32 %v2019, %v2022
      %vm2024 = vweird.f32 %v1958
      %vm2025 = vweird.f32 %v2019
      %vm2026 = vmor %vm2024, %vm2025
      %v2027 = vsel %vm2026, %v2019, %v2023
      %v2028 = vand.u32 2147483647, %v1958
      %vm2029 = vcmp.eq.f32.partialorder %v2028, 8.507059e+37
      %v2030 = vand.u32 %v1958, 2147483648
      %v2031 = vor.u32 1.1754944e-38, %v2030
      %v2032 = vsel %vm2029, %v2031, %v2027
      %v2033 = vmul.f32 %v1953, %v2032
      %v2034 = vsel %vm1944, %v1973, %v1883
      %v2035 = vsel %vm1945, %v1988, %v1898
      %v2036 = vsel %vm1946, %v2003, %v1913
      %v2037 = vsel %vm1947, %v2018, %v1928
      %v2038 = vsel %vm1948, %v2033, %v1943
      %v2039 = vmul.f32 %v2034, %v2034
      %v2040 = vmul.f32 %v2035, %v2035
      %v2041 = vmul.f32 %v2036, %v2036
      %v2042 = vmul.f32 %v2037, %v2037
      %v2043 = vmul.f32 %v2038, %v2038
      %v2044 = vmul.f32 %v2039, -0.09090909
      %v2045 = vmul.f32 %v2040, -0.09090909
      %v2046 = vmul.f32 %v2041, -0.09090909
      %v2047 = vmul.f32 %v2042, -0.09090909
      %v2048 = vmul.f32 %v2043, -0.09090909
      %v2049 = vadd.f32 %v2044, 0.11111111
      %v2050 = vadd.f32 %v2045, 0.11111111
      %v2051 = vadd.f32 %v2046, 0.11111111
      %v2052 = vadd.f32 %v2047, 0.11111111
      %v2053 = vadd.f32 %v2048, 0.11111111
      %v2054 = vmul.f32 %v2049, %v2039
      %v2055 = vmul.f32 %v2050, %v2040
      %v2056 = vmul.f32 %v2051, %v2041
      %v2057 = vmul.f32 %v2052, %v2042
      %v2058 = vmul.f32 %v2053, %v2043
      %v2059 = vadd.f32 %v2054, -0.14285715
      %v2060 = vadd.f32 %v2055, -0.14285715
      %v2061 = vadd.f32 %v2056, -0.14285715
      %v2062 = vadd.f32 %v2057, -0.14285715
      %v2063 = vadd.f32 %v2058, -0.14285715
      %v2064 = vmul.f32 %v2059, %v2039
      %v2065 = vmul.f32 %v2060, %v2040
      %v2066 = vmul.f32 %v2061, %v2041
      %v2067 = vmul.f32 %v2062, %v2042
      %v2068 = vmul.f32 %v2063, %v2043
      %v2069 = vadd.f32 %v2064, 0.2
      %v2070 = vadd.f32 %v2065, 0.2
      %v2071 = vadd.f32 %v2066, 0.2
      %v2072 = vadd.f32 %v2067, 0.2
      %v2073 = vadd.f32 %v2068, 0.2
      %v2074 = vmul.f32 %v2069, %v2039
      %v2075 = vmul.f32 %v2070, %v2040
      %v2076 = vmul.f32 %v2071, %v2041
      %v2077 = vmul.f32 %v2072, %v2042
      %v2078 = vmul.f32 %v2073, %v2043
      %v2079 = vadd.f32 %v2074, -0.33333334
      %v2080 = vadd.f32 %v2075, -0.33333334
      %v2081 = vadd.f32 %v2076, -0.33333334
      %v2082 = vadd.f32 %v2077, -0.33333334
      %v2083 = vadd.f32 %v2078, -0.33333334
      %v2084 = vmul.f32 %v2079, %v2039
      %v2085 = vmul.f32 %v2080, %v2040
      %v2086 = vmul.f32 %v2081, %v2041
      %v2087 = vmul.f32 %v2082, %v2042
      %v2088 = vmul.f32 %v2083, %v2043
      %v2089 = vadd.f32 %v2084, 1.0
      %v2090 = vadd.f32 %v2085, 1.0
      %v2091 = vadd.f32 %v2086, 1.0
      %v2092 = vadd.f32 %v2087, 1.0
      %v2093 = vadd.f32 %v2088, 1.0
      %v2094 = vmul.f32 %v2034, %v2089
      %v2095 = vmul.f32 %v2035, %v2090
      %v2096 = vmul.f32 %v2036, %v2091
      %v2097 = vmul.f32 %v2037, %v2092
      %v2098 = vmul.f32 %v2038, %v2093
      %v2099 = vsel %vm1944, 0.7853982, 0.0
      %v2100 = vsel %vm1945, 0.7853982, 0.0
      %v2101 = vsel %vm1946, 0.7853982, 0.0
      %v2102 = vsel %vm1947, 0.7853982, 0.0
      %v2103 = vsel %vm1948, 0.7853982, 0.0
      %v2104 = vadd.f32 %v2094, %v2099
      %v2105 = vadd.f32 %v2095, %v2100
      %v2106 = vadd.f32 %v2096, %v2101
      %v2107 = vadd.f32 %v2097, %v2102
      %v2108 = vadd.f32 %v2098, %v2103
      %vm2109 = vcmp.gt.f32.partialorder %v1844, %v1849
      %vm2110 = vcmp.gt.f32.partialorder %v1845, %v1850
      %vm2111 = vcmp.gt.f32.partialorder %v1846, %v1851
      %vm2112 = vcmp.gt.f32.partialorder %v1847, %v1852
      %vm2113 = vcmp.gt.f32.partialorder %v1848, %v1853
      %v2114 = vsub.f32 1.5707964, %v2104
      %v2115 = vsub.f32 1.5707964, %v2105
      %v2116 = vsub.f32 1.5707964, %v2106
      %v2117 = vsub.f32 1.5707964, %v2107
      %v2118 = vsub.f32 1.5707964, %v2108
      %v2119 = vsel %vm2109, %v2114, %v2104
      %v2120 = vsel %vm2110, %v2115, %v2105
      %v2121 = vsel %vm2111, %v2116, %v2106
      %v2122 = vsel %vm2112, %v2117, %v2107
      %v2123 = vsel %vm2113, %v2118, %v2108
      %vm2124 = vcmp.lt.f32.partialorder %v1839, 0.0
      %vm2125 = vcmp.lt.f32.partialorder %v1840, 0.0
      %vm2126 = vcmp.lt.f32.partialorder %v1841, 0.0
      %vm2127 = vcmp.lt.f32.partialorder %v1842, 0.0
      %vm2128 = vcmp.lt.f32.partialorder %v1843, 0.0
      %v2129 = vsub.f32 3.1415927, %v2119
      %v2130 = vsub.f32 3.1415927, %v2120
      %v2131 = vsub.f32 3.1415927, %v2121
      %v2132 = vsub.f32 3.1415927, %v2122
      %v2133 = vsub.f32 3.1415927, %v2123
      %v2134 = vsel %vm2124, %v2129, %v2119
      %v2135 = vsel %vm2125, %v2130, %v2120
      %v2136 = vsel %vm2126, %v2131, %v2121
      %v2137 = vsel %vm2127, %v2132, %v2122
      %v2138 = vsel %vm2128, %v2133, %v2123
      %vm2139 = vcmp.lt.f32.partialorder %v1834, 0.0
      %vm2140 = vcmp.lt.f32.partialorder %v1835, 0.0
      %vm2141 = vcmp.lt.f32.partialorder %v1836, 0.0
      %vm2142 = vcmp.lt.f32.partialorder %v1837, 0.0
      %vm2143 = vcmp.lt.f32.partialorder %v1838, 0.0
      %v2144 = vsub.f32 0.0, %v2134
      %v2145 = vsub.f32 0.0, %v2135
      %v2146 = vsub.f32 0.0, %v2136
      %v2147 = vsub.f32 0.0, %v2137
      %v2148 = vsub.f32 0.0, %v2138
      %v2149 = vsel %vm2139, %v2144, %v2134
      %v2150 = vsel %vm2140, %v2145, %v2135
      %v2151 = vsel %vm2141, %v2146, %v2136
      %v2152 = vsel %vm2142, %v2147, %v2137
      %v2153 = vsel %vm2143, %v2148, %v2138
      %2154 = vst [vmem:[%s291] sm:$0xff] %v1785
      %2155 = vst [vmem:[%s291 + $0x8] sm:$0xff] %v1797
      %2156 = vst [vmem:[%s291 + $0x10] sm:$0xff] %v1809
      %2157 = vst [vmem:[%s291 + $0x18] sm:$0xff] %v1821
      %2158 = vst [vmem:[%s291 + $0x20] sm:$0x1] %v1833
      %2159 = vst [vmem:[%s299] sm:$0xff] %v2149
      %2160 = vst [vmem:[%s299 + $0x8] sm:$0xff] %v2150
      %2161 = vst [vmem:[%s299 + $0x10] sm:$0xff] %v2151
      %2162 = vst [vmem:[%s299 + $0x18] sm:$0xff] %v2152
      %2163 = vst [vmem:[%s299 + $0x20] sm:$0x1] %v2153
      %p2164 = scmp.lt.s32.totalorder %s20, 1
      %s2165 = scalar_select %p2164, %s20, 1
      %p2166 = scmp.lt.s32.totalorder %s21, 0
      %s2167 = scalar_select %p2166, %s21, 0
      %s2168 = smul.addr %s2165, 5
      %s2169 = sadd.s32 %s2167, %s2168
      %s2170 = smul.addr %s2169, 8
      %s2171 = scalar_lea.vmem %s3, %s2170
      %p2172 = scmp.lt.s32.totalorder %s20, 1
      %s2173 = scalar_select %p2172, %s20, 1
      %p2174 = scmp.lt.s32.totalorder %s21, 0
      %s2175 = scalar_select %p2174, %s21, 0
      %s2176 = smul.addr %s2173, 5
      %s2177 = sadd.s32 %s2175, %s2176
      %s2178 = smul.addr %s2177, 8
      %s2179 = scalar_lea.vmem %s4, %s2178
      // Predicated region
      $region33: #{_stft_layer_impl.1} parent=31 // pred_check
        %p2180 = pneg %p125
      $region34: #{_stft_layer_impl.1} parent=31 // pred_check_branch
        %2182 = sbr.rel (%p2180) target = $region36
      $region35: #{_stft_layer_impl.1} parent=31 // pred_region
        _
      $region36: #{_stft_layer_impl.1} parent=31 // pred_fallthru
        _
      // Predicated region
      $region37: #{_stft_layer_impl.1} parent=31 // pred_check
        %p2183 = pneg %p153
      $region38: #{_stft_layer_impl.1} parent=31 // pred_check_branch
        %2185 = sbr.rel (%p2183) target = $region40
      $region39: #{_stft_layer_impl.1} parent=31 // pred_region
        _
      $region40: #{_stft_layer_impl.1} parent=31 // pred_fallthru
        _
    $region32: #{_stft_layer_impl.1} parent=5 // pred_fallthru
      _
    %p2186 = scmp.le.s32.totalorder 2, %s11
    // Predicated region
    $region41: #{_stft_layer_impl.1} parent=5 // pred_check
      %p2187 = pneg %p2186
    $region42: #{_stft_layer_impl.1} parent=5 // pred_check_branch
      %2189 = sbr.rel (%p2187) target = $region44
    $region43: #{_stft_layer_impl.1} parent=5 // pred_region
      %s2190 = ssub.s32 %s11, 2
      // Predicated region
      $region45: #{_stft_layer_impl.1} parent=43 // pred_check
        %p2191 = pneg %p131
      $region46: #{_stft_layer_impl.1} parent=43 // pred_check_branch
        %2193 = sbr.rel (%p2191) target = $region48
      $region47: #{_stft_layer_impl.1} parent=43 // pred_region
        %p2194 = scmp.lt.s32.totalorder %s22, 1
        %s2195 = scalar_select %p2194, %s22, 1
        %p2196 = scmp.lt.s32.totalorder %s23, 0
        %s2197 = scalar_select %p2196, %s23, 0
        %s2198 = smul.addr %s2195, 5
        %s2199 = sadd.s32 %s2197, %s2198
        %s2200 = smul.addr %s2199, 8
        %s2201 = scalar_lea.vmem %s3, %s2200
      $region48: #{_stft_layer_impl.1} parent=43 // pred_fallthru
        _
      // Predicated region
      $region49: #{_stft_layer_impl.1} parent=43 // pred_check
        %p2202 = pneg %p159
      $region50: #{_stft_layer_impl.1} parent=43 // pred_check_branch
        %2204 = sbr.rel (%p2202) target = $region52
      $region51: #{_stft_layer_impl.1} parent=43 // pred_region
        %p2205 = scmp.lt.s32.totalorder %s22, 1
        %s2206 = scalar_select %p2205, %s22, 1
        %p2207 = scmp.lt.s32.totalorder %s23, 0
        %s2208 = scalar_select %p2207, %s23, 0
        %s2209 = smul.addr %s2206, 5
        %s2210 = sadd.s32 %s2208, %s2209
        %s2211 = smul.addr %s2210, 8
        %s2212 = scalar_lea.vmem %s4, %s2211
      $region52: #{_stft_layer_impl.1} parent=43 // pred_fallthru
        _
    $region44: #{_stft_layer_impl.1} parent=5 // pred_fallthru
      _
  $region6: #{_stft_layer_impl.1} parent=0 // loop_footer
    %s15 = sadd.s32 1, %s11
  $region7: #{_stft_layer_impl.1} parent=0 // loop_footer_branch
    %10 = sbr.rel target = $region3
  $region8: #{_stft_layer_impl.1} parent=0 // loop_exit
    _

</llo_original>
